<compile_context>
chip_gen: v7x
topology: tpu7x:2x2x1
jax: 0.10.0
libtpu: 0.0.40
codegen_flags: <defaults>
</compile_context>

<pallas_src>
import jax
import jax.numpy as jnp
from jax.experimental import pallas as pl
from jax.experimental.pallas import tpu as pltpu

D = 2            # mesh.geometric_dimension()
H = 50           # hidden_layers_size
NUM_HIDDEN = 2   # num_hidden_layers
MAX_TN = 2048    # upper bound on vertices per grid step (multiple of 128 lanes)
USE_BF16_MATMUL = True  # bf16 MXU operands, f32 accumulation (all TPU gens)


def mlp_kernel(x_ref, w0_ref, b0_ref, w1_ref, b1_ref, w2_ref, b2_ref,
               wo_ref, bo_ref, o_ref):
    # Fused forward pass for one tile of TN vertices, vertices on lanes.
    #   x_ref : (D, TN) f32   w* : (out, in)   b* : (out, 1) f32   o_ref : (1, TN) f32
    x = x_ref[...]
    w0 = w0_ref[...]
    w1 = w1_ref[...]
    w2 = w2_ref[...]

    # Layer 0 (K=2): VPU broadcast-FMA "outer product" instead of a padded MXU pass.
    h = jnp.tanh(w0[:, 0:1] * x[0:1, :] + w0[:, 1:2] * x[1:2, :] + b0_ref[...])

    # Hidden layers: MXU matmuls (bf16 operands if enabled), f32 accumulation,
    # f32 bias + tanh (portable to v5e's f32-only VPU/EUP).
    h = jnp.tanh(jnp.dot(w1, h.astype(w1.dtype),
                         preferred_element_type=jnp.float32) + b1_ref[...])
    h = jnp.tanh(jnp.dot(w2, h.astype(w2.dtype),
                         preferred_element_type=jnp.float32) + b2_ref[...])

    # Readout (M=1): VPU multiply + sublane reduction (XLU) instead of a padded MXU pass.
    o_ref[...] = jnp.sum(wo_ref[...].T * h, axis=0, keepdims=True) + bo_ref[...]


def _choose_tile(n, lane=128, max_tn=MAX_TN):
    """Largest lane-multiple tile <= max_tn giving an EVEN number of grid steps,
    so v7x's two TensorCores get balanced work with minimal padding."""
    steps = 2
    tn = pl.cdiv(pl.cdiv(n, steps), lane) * lane
    while tn > max_tn:
        steps += 2
        tn = pl.cdiv(pl.cdiv(n, steps), lane) * lane
    return tn


def mlp_forward(x, params, tn=None):
    """x: (N, D) vertex positions -> (N, 1) scalar field."""
    (w0, b0), (w1, b1), (w2, b2), (wo, bo) = params
    N, d = x.shape
    assert d == D

    if tn is None:
        tn = _choose_tile(N)
    n_pad = pl.cdiv(N, tn) * tn
    grid = n_pad // tn

    # Lane-dense (D, N) layout, zero-padded to a tile multiple.
    xt = jnp.pad(x.astype(jnp.float32).T, ((0, 0), (0, n_pad - N)))

    mm_dtype = jnp.bfloat16 if USE_BF16_MATMUL else jnp.float32
    w1c = w1.astype(mm_dtype)
    w2c = w2.astype(mm_dtype)

    full = lambda shape: pl.BlockSpec(shape, lambda i: (0, 0))  # grid-invariant

    weight_bytes = (H * D + 2 * H * H + H + 3 * H + 1) * 4
    cost = pl.CostEstimate(
        flops=2 * N * (H * D + 2 * H * H + H),
        transcendentals=3 * H * N,
        bytes_accessed=(D + 1) * N * 4 + weight_bytes,
    )

    out = pl.pallas_call(
        mlp_kernel,
        out_shape=jax.ShapeDtypeStruct((1, n_pad), jnp.float32),
        grid_spec=pltpu.PrefetchScalarGridSpec(
            num_scalar_prefetch=0,
            grid=(grid,),
            in_specs=[
                pl.BlockSpec((D, tn), lambda i: (0, i)),   # x tile (lane-dense)
                full((H, D)), full((H, 1)),                # input layer
                full((H, H)), full((H, 1)),                # hidden 0
                full((H, H)), full((H, 1)),                # hidden 1
                full((1, H)), full((1, 1)),                # output layer
            ],
            out_specs=pl.BlockSpec((1, tn), lambda i: (0, i)),  # lane-dense store
        ),
        compiler_params=pltpu.CompilerParams(
            dimension_semantics=("parallel",)),
        cost_estimate=cost,
    )(xt, w0, b0, w1c, b1, w2c, b2, wo, bo)

    return out[0, :N].reshape(N, 1)


def init_linear(key, fan_in, fan_out):
    # Mimic torch.nn.Linear default init: U(-1/sqrt(fan_in), 1/sqrt(fan_in)).
    # Stored in torch's native layout: W (out, in), b (out, 1).
    k_w, k_b = jax.random.split(key)
    bound = 1.0 / (fan_in ** 0.5)
    w = jax.random.uniform(k_w, (fan_out, fan_in), jnp.float32, -bound, bound)
    b = jax.random.uniform(k_b, (fan_out, 1), jnp.float32, -bound, bound)
    return w, b


def init_params(key):
    keys = jax.random.split(key, 2 + NUM_HIDDEN)
    params = [init_linear(keys[0], D, H)]
    for i in range(NUM_HIDDEN):
        params.append(init_linear(keys[1 + i], H, H))
    params.append(init_linear(keys[-1], H, 1))
    return params


def mlp_reference(x, params):
    # Independent f32 reference in the standard (N, D) orientation.
    (w0, b0), (w1, b1), (w2, b2), (wo, bo) = params
    h = jnp.tanh(x @ w0.T + b0.T)
    h = jnp.tanh(h @ w1.T + b1.T)
    h = jnp.tanh(h @ w2.T + b2.T)
    return h @ wo.T + bo.T


if __name__ == "__main__":
    key = jax.random.PRNGKey(0)
    k_x, k_p = jax.random.split(key)

    N = 5000  # number of mesh vertex positions (not a tile multiple -> padding path)
    x = jax.random.uniform(k_x, (N, D), jnp.float32)  # positions in [0, 1)^D
    params = init_params(k_p)

    out = mlp_forward(x, params)
    out = jax.block_until_ready(out)

    ref = mlp_reference(x, params)
    assert out.shape == (N, 1)
    # bf16 MXU operands (f32 accumulation) introduce O(1e-3) absolute error vs f32.
    tol = 2e-2 if USE_BF16_MATMUL else 1e-5
    assert jnp.allclose(out, ref, atol=tol, rtol=tol), "mismatch vs reference"

    print("KERNEL_OK")
</pallas_src>

<mosaic_0001>
module attributes {stable_mosaic.version = 11 : i64} {
  func.func @mlp_kernel(%arg0: i32, %arg1: memref<2x1280xf32, #tpu.memory_space<vmem>>, %arg2: memref<50x2xf32, #tpu.memory_space<vmem>>, %arg3: memref<50x1xf32, #tpu.memory_space<vmem>>, %arg4: memref<50x50xbf16, #tpu.memory_space<vmem>>, %arg5: memref<50x1xf32, #tpu.memory_space<vmem>>, %arg6: memref<50x50xbf16, #tpu.memory_space<vmem>>, %arg7: memref<50x1xf32, #tpu.memory_space<vmem>>, %arg8: memref<1x50xf32, #tpu.memory_space<vmem>>, %arg9: memref<1x1xf32, #tpu.memory_space<vmem>>, %arg10: memref<1x1280xf32, #tpu.memory_space<vmem>>) attributes {dimension_semantics = [#tpu.dimension_semantics<parallel>], iteration_bounds = array<i64: 4>, scalar_prefetch = 0 : i64, scratch_operands = 0 : i64, tpu.core_type = #tpu.core_type<tc>, window_params = [{transform_indices = @transform_0, window_bounds = array<i64: 2, 1280>}, {pipeline_mode = #tpu.pipeline_mode<synchronous>, transform_indices = @transform_1, window_bounds = array<i64: 50, 2>}, {pipeline_mode = #tpu.pipeline_mode<synchronous>, transform_indices = @transform_2, window_bounds = array<i64: 50, 1>}, {pipeline_mode = #tpu.pipeline_mode<synchronous>, transform_indices = @transform_3, window_bounds = array<i64: 50, 50>}, {pipeline_mode = #tpu.pipeline_mode<synchronous>, transform_indices = @transform_4, window_bounds = array<i64: 50, 1>}, {pipeline_mode = #tpu.pipeline_mode<synchronous>, transform_indices = @transform_5, window_bounds = array<i64: 50, 50>}, {pipeline_mode = #tpu.pipeline_mode<synchronous>, transform_indices = @transform_6, window_bounds = array<i64: 50, 1>}, {pipeline_mode = #tpu.pipeline_mode<synchronous>, transform_indices = @transform_7, window_bounds = array<i64: 1, 50>}, {pipeline_mode = #tpu.pipeline_mode<synchronous>, transform_indices = @transform_8, window_bounds = array<i64: 1, 1>}, {transform_indices = @transform_9, window_bounds = array<i64: 1, 1280>}]} {
    %c0 = arith.constant 0 : index
    %c0_0 = arith.constant 0 : index
    %0 = vector.load %arg1[%c0, %c0_0] : memref<2x1280xf32, #tpu.memory_space<vmem>>, vector<2x1280xf32>
    %c0_1 = arith.constant 0 : index
    %c0_2 = arith.constant 0 : index
    %1 = vector.load %arg2[%c0_1, %c0_2] : memref<50x2xf32, #tpu.memory_space<vmem>>, vector<50x2xf32>
    %c0_3 = arith.constant 0 : index
    %c0_4 = arith.constant 0 : index
    %2 = vector.load %arg4[%c0_3, %c0_4] : memref<50x50xbf16, #tpu.memory_space<vmem>>, vector<50x50xbf16>
    %c0_5 = arith.constant 0 : index
    %c0_6 = arith.constant 0 : index
    %3 = vector.load %arg6[%c0_5, %c0_6] : memref<50x50xbf16, #tpu.memory_space<vmem>>, vector<50x50xbf16>
    %4 = vector.extract_strided_slice %1 {offsets = [0, 0], sizes = [50, 1], strides = [1, 1]} : vector<50x2xf32> to vector<50x1xf32>
    %5 = vector.extract_strided_slice %0 {offsets = [0, 0], sizes = [1, 1280], strides = [1, 1]} : vector<2x1280xf32> to vector<1x1280xf32>
    %6 = vector.broadcast %4 : vector<50x1xf32> to vector<50x1280xf32>
    %7 = vector.broadcast %5 : vector<1x1280xf32> to vector<50x1280xf32>
    %8 = arith.mulf %6, %7 : vector<50x1280xf32>
    %9 = vector.extract_strided_slice %1 {offsets = [0, 1], sizes = [50, 1], strides = [1, 1]} : vector<50x2xf32> to vector<50x1xf32>
    %10 = vector.extract_strided_slice %0 {offsets = [1, 0], sizes = [1, 1280], strides = [1, 1]} : vector<2x1280xf32> to vector<1x1280xf32>
    %11 = vector.broadcast %9 : vector<50x1xf32> to vector<50x1280xf32>
    %12 = vector.broadcast %10 : vector<1x1280xf32> to vector<50x1280xf32>
    %13 = arith.mulf %11, %12 : vector<50x1280xf32>
    %14 = arith.addf %8, %13 : vector<50x1280xf32>
    %c0_7 = arith.constant 0 : index
    %c0_8 = arith.constant 0 : index
    %15 = vector.load %arg3[%c0_7, %c0_8] : memref<50x1xf32, #tpu.memory_space<vmem>>, vector<50x1xf32>
    %16 = vector.broadcast %15 : vector<50x1xf32> to vector<50x1280xf32>
    %17 = arith.addf %14, %16 : vector<50x1280xf32>
    %18 = math.tanh %17 : vector<50x1280xf32>
    %19 = arith.truncf %18 : vector<50x1280xf32> to vector<50x1280xbf16>
    %cst = arith.constant dense<0.000000e+00> : vector<50x1280xf32>
    %20 = tpu.matmul %2, %19, %cst {dimension_numbers = #tpu.dot_dimension_numbers<[1], [0], [0], [1], [0, 0, 1, 1], [], []>} : vector<50x50xbf16>, vector<50x1280xbf16>, vector<50x1280xf32> -> vector<50x1280xf32>
    %c0_9 = arith.constant 0 : index
    %c0_10 = arith.constant 0 : index
    %21 = vector.load %arg5[%c0_9, %c0_10] : memref<50x1xf32, #tpu.memory_space<vmem>>, vector<50x1xf32>
    %22 = vector.broadcast %21 : vector<50x1xf32> to vector<50x1280xf32>
    %23 = arith.addf %20, %22 : vector<50x1280xf32>
    %24 = math.tanh %23 : vector<50x1280xf32>
    %25 = arith.truncf %24 : vector<50x1280xf32> to vector<50x1280xbf16>
    %cst_11 = arith.constant dense<0.000000e+00> : vector<50x1280xf32>
    %26 = tpu.matmul %3, %25, %cst_11 {dimension_numbers = #tpu.dot_dimension_numbers<[1], [0], [0], [1], [0, 0, 1, 1], [], []>} : vector<50x50xbf16>, vector<50x1280xbf16>, vector<50x1280xf32> -> vector<50x1280xf32>
    %c0_12 = arith.constant 0 : index
    %c0_13 = arith.constant 0 : index
    %27 = vector.load %arg7[%c0_12, %c0_13] : memref<50x1xf32, #tpu.memory_space<vmem>>, vector<50x1xf32>
    %28 = vector.broadcast %27 : vector<50x1xf32> to vector<50x1280xf32>
    %29 = arith.addf %26, %28 : vector<50x1280xf32>
    %30 = math.tanh %29 : vector<50x1280xf32>
    %c0_14 = arith.constant 0 : index
    %c0_15 = arith.constant 0 : index
    %31 = vector.load %arg8[%c0_14, %c0_15] : memref<1x50xf32, #tpu.memory_space<vmem>>, vector<1x50xf32>
    %32 = tpu.transpose %31, [1, 0] : vector<1x50xf32> -> vector<50x1xf32>
    %33 = vector.broadcast %32 : vector<50x1xf32> to vector<50x1280xf32>
    %34 = arith.mulf %33, %30 : vector<50x1280xf32>
    %cst_16 = arith.constant dense<0.000000e+00> : vector<1280xf32>
    %35 = vector.multi_reduction <add>, %34, %cst_16 [0] : vector<50x1280xf32> to vector<1280xf32>
    %36 = vector.shape_cast %35 : vector<1280xf32> to vector<1x1280xf32>
    %c0_17 = arith.constant 0 : index
    %c0_18 = arith.constant 0 : index
    %37 = vector.load %arg9[%c0_17, %c0_18] : memref<1x1xf32, #tpu.memory_space<vmem>>, vector<1x1xf32>
    %38 = vector.broadcast %37 : vector<1x1xf32> to vector<1x1280xf32>
    %39 = arith.addf %36, %38 : vector<1x1280xf32>
    %c0_19 = arith.constant 0 : index
    %c0_20 = arith.constant 0 : index
    %40 = vector.load %arg10[%c0_19, %c0_20] : memref<1x1280xf32, #tpu.memory_space<vmem>>, vector<1x1280xf32>
    tpu.vector_store %arg10[%c0_19, %c0_20], %39 {strides = array<i32>} : memref<1x1280xf32, #tpu.memory_space<vmem>>, vector<1x1280xf32>,
    return
  }
  func.func @transform_0(%arg0: i32) -> (i32, i32) {
    %c0_i32 = arith.constant 0 : i32
    %c0_i32_0 = arith.constant 0 : i32
    return %c0_i32, %arg0 : i32, i32
  }
  func.func @transform_1(%arg0: i32) -> (i32, i32) {
    %c0_i32 = arith.constant 0 : i32
    %c0_i32_0 = arith.constant 0 : i32
    %c0_i32_1 = arith.constant 0 : i32
    return %c0_i32, %c0_i32_0 : i32, i32
  }
  func.func @transform_2(%arg0: i32) -> (i32, i32) {
    %c0_i32 = arith.constant 0 : i32
    %c0_i32_0 = arith.constant 0 : i32
    %c0_i32_1 = arith.constant 0 : i32
    return %c0_i32, %c0_i32_0 : i32, i32
  }
  func.func @transform_3(%arg0: i32) -> (i32, i32) {
    %c0_i32 = arith.constant 0 : i32
    %c0_i32_0 = arith.constant 0 : i32
    %c0_i32_1 = arith.constant 0 : i32
    return %c0_i32, %c0_i32_0 : i32, i32
  }
  func.func @transform_4(%arg0: i32) -> (i32, i32) {
    %c0_i32 = arith.constant 0 : i32
    %c0_i32_0 = arith.constant 0 : i32
    %c0_i32_1 = arith.constant 0 : i32
    return %c0_i32, %c0_i32_0 : i32, i32
  }
  func.func @transform_5(%arg0: i32) -> (i32, i32) {
    %c0_i32 = arith.constant 0 : i32
    %c0_i32_0 = arith.constant 0 : i32
    %c0_i32_1 = arith.constant 0 : i32
    return %c0_i32, %c0_i32_0 : i32, i32
  }
  func.func @transform_6(%arg0: i32) -> (i32, i32) {
    %c0_i32 = arith.constant 0 : i32
    %c0_i32_0 = arith.constant 0 : i32
    %c0_i32_1 = arith.constant 0 : i32
    return %c0_i32, %c0_i32_0 : i32, i32
  }
  func.func @transform_7(%arg0: i32) -> (i32, i32) {
    %c0_i32 = arith.constant 0 : i32
    %c0_i32_0 = arith.constant 0 : i32
    %c0_i32_1 = arith.constant 0 : i32
    return %c0_i32, %c0_i32_0 : i32, i32
  }
  func.func @transform_8(%arg0: i32) -> (i32, i32) {
    %c0_i32 = arith.constant 0 : i32
    %c0_i32_0 = arith.constant 0 : i32
    %c0_i32_1 = arith.constant 0 : i32
    return %c0_i32, %c0_i32_0 : i32, i32
  }
  func.func @transform_9(%arg0: i32) -> (i32, i32) {
    %c0_i32 = arith.constant 0 : i32
    %c0_i32_0 = arith.constant 0 : i32
    return %c0_i32, %arg0 : i32, i32
  }
}

</mosaic_0001>

<llo_original>
// kernel: tpu_custom_call.1
$region0: #{tpu_custom_call.1}
  #allocation0 [shape = 'u32[]', space=smem, size = 0x4, offset = 0x4, fixed_abs, tag = 'smem constant byte address 0x4 - core index']
  #allocation1 [shape = 'u32[144,128]{1,0:T(1,128)}', space=vmem, size = 0x12000, scoped, tag = 'internal scratch']
  #allocation2 [shape = 'f32[1,1]{1,0:T(1,128)S(1)}', space=vmem, size = 0x200, scoped, tag = 'scoped memory for tpu_custom_call.1']
  %s0 = inlined_call_operand.vmem [shape: f32[2,5120], index: 0, kind: input, shape index: {}]
  %s1 = inlined_call_operand.vmem [shape: f32[50,2], index: 1, kind: input, shape index: {}]
  %s2 = inlined_call_operand.vmem [shape: f32[50,1], index: 2, kind: input, shape index: {}]
  %s3 = inlined_call_operand.vmem [shape: bf16[50,50], index: 3, kind: input, shape index: {}]
  %s4 = inlined_call_operand.vmem [shape: f32[50,1], index: 4, kind: input, shape index: {}]
  %s5 = inlined_call_operand.vmem [shape: bf16[50,50], index: 5, kind: input, shape index: {}]
  %s6 = inlined_call_operand.vmem [shape: f32[50,1], index: 6, kind: input, shape index: {}]
  %s7 = inlined_call_operand.vmem [shape: f32[1,50], index: 7, kind: input, shape index: {}]
  %s8 = inlined_call_operand.<no memory space> [shape: f32[1,1], index: 8, kind: input, shape index: {}]
  %s9 = inlined_call_operand.hbm [shape: f32[1,5120], index: 9, kind: output, shape index: {}]
  %s10 = sld [smem:[#allocation0]]
  $region69: #{tpu_custom_call.1} parent=0
    _
  %s12 = ssub.s32 1, %s10
  %s13 = scalar_select 0, %s12, %s10
  %v14 = vstv %s8
  %15 = vst [vmem:[#allocation2] sm:$0x1] %v14
  $region1: #{tpu_custom_call.1} parent=0
    #allocation3 [shape = 'u8[10240]{0}', space=vmem, size = 0x2800, scoped, tag = 'output window, operand 0']
    #allocation4 [shape = 's32[2]{0}', space=sflag, size = 0x8, scoped, tag = 'scoped memory for tpu_custom_call.1']
    %16 = vsyncpa [#allocation4], 0
    %s17 = scalar_lea.sflag [#allocation4], 1
    %18 = vsyncpa %s17, 0
    loop: start=0, step=1, limit=6
    $region2: #{tpu_custom_call.1} parent=1 // loop_pre_header
      _
    $region3: #{tpu_custom_call.1} parent=1 // loop_header
      %s20 = sphi 0, %s24
      %p21 = scmp.ge.s32.totalorder %s20, 6
      %s30 = sphi 0, %s32
      %s33 = sphi 0, %s30
      %s34 = sphi 0, %s33
      %s50 = sphi 0, %s34
      %s54 = sphi 0, %s54
      %s56 = sphi 0, %s54
      %s57 = sphi 0, %s56
      %s71 = sphi 0, %s57
      %s75 = sphi 0, %s75
      %s77 = sphi 0, %s75
      %s78 = sphi 0, %s77
      %s92 = sphi 0, %s78
      %s96 = sphi 0, %s96
      %s98 = sphi 0, %s96
      %s99 = sphi 0, %s98
      %s113 = sphi 0, %s99
      %s117 = sphi 0, %s117
      %s119 = sphi 0, %s117
      %s120 = sphi 0, %s119
      %s134 = sphi 0, %s120
      %s138 = sphi 0, %s138
      %s140 = sphi 0, %s138
      %s141 = sphi 0, %s140
      %s155 = sphi 0, %s141
      %s159 = sphi 0, %s159
      %s161 = sphi 0, %s159
      %s162 = sphi 0, %s161
      %s176 = sphi 0, %s162
      %s180 = sphi 0, %s180
      %s182 = sphi 0, %s180
      %s183 = sphi 0, %s182
      %s197 = sphi 0, %s183
      %s201 = sphi 0, %s201
      %s203 = sphi 0, %s201
      %s204 = sphi 0, %s203
      %s218 = sphi 0, %s204
      %s224 = sphi 0, %s226
      %s227 = sphi 0, %s224
      %s228 = sphi 0, %s227
      %s244 = sphi 0, %s228
    $region4: #{tpu_custom_call.1} parent=1 // loop_header_branch
      %23 = sbr.rel (%p21) target = $region8
    $region5: #{tpu_custom_call.1} parent=1 // loop_body
      %s25 = ssub.s32 %s20, 1
      %s26 = ssub.s32 %s20, 2
      %s27 = sadd.s32 %s20, 1
      %s28 = ssub.s32 %s20, %s27
      %p29 = scmp.eq.s32.totalorder %s28, 0
      %s31 = sadd.s32 %s30, 1
      %s32 = scalar_select %p29, %s30, %s31
      %p35 = pneg %p29
      %p36 = scmp.eq.s32.totalorder %s20, 3
      %p37 = por %p35, %p36
      %p38 = scmp.ne.s32.totalorder %s30, %s33
      %p39 = scmp.eq.s32.totalorder %s20, 0
      %p40 = por %p38, %p39
      %p41 = scmp.ne.s32.totalorder %s30, %s33
      %p42 = scmp.eq.s32.totalorder %s25, 3
      %p43 = por %p41, %p42
      %p44 = scmp.ne.s32.totalorder %s33, %s34
      %p45 = scmp.eq.s32.totalorder %s25, 0
      %p46 = por %p44, %p45
      %p47 = scmp.ne.s32.totalorder %s33, %s34
      %p48 = scmp.eq.s32.totalorder %s26, 3
      %p49 = por %p47, %p48
      %p51 = scmp.ne.s32.totalorder %s34, %s50
      %p52 = scmp.eq.s32.totalorder %s26, 0
      %p53 = por %p51, %p52
      %s55 = sadd.s32 %s54, 1
      %p58 = scmp.eq.s32.totalorder %s20, 3
      %p59 = scmp.ne.s32.totalorder %s54, %s56
      %p60 = scmp.eq.s32.totalorder %s20, 0
      %p61 = por %p59, %p60
      %p62 = scmp.ne.s32.totalorder %s54, %s56
      %p63 = scmp.eq.s32.totalorder %s25, 3
      %p64 = por %p62, %p63
      %p65 = scmp.ne.s32.totalorder %s56, %s57
      %p66 = scmp.eq.s32.totalorder %s25, 0
      %p67 = por %p65, %p66
      %p68 = scmp.ne.s32.totalorder %s56, %s57
      %p69 = scmp.eq.s32.totalorder %s26, 3
      %p70 = por %p68, %p69
      %p72 = scmp.ne.s32.totalorder %s57, %s71
      %p73 = scmp.eq.s32.totalorder %s26, 0
      %p74 = por %p72, %p73
      %s76 = sadd.s32 %s75, 1
      %p79 = scmp.eq.s32.totalorder %s20, 3
      %p80 = scmp.ne.s32.totalorder %s75, %s77
      %p81 = scmp.eq.s32.totalorder %s20, 0
      %p82 = por %p80, %p81
      %p83 = scmp.ne.s32.totalorder %s75, %s77
      %p84 = scmp.eq.s32.totalorder %s25, 3
      %p85 = por %p83, %p84
      %p86 = scmp.ne.s32.totalorder %s77, %s78
      %p87 = scmp.eq.s32.totalorder %s25, 0
      %p88 = por %p86, %p87
      %p89 = scmp.ne.s32.totalorder %s77, %s78
      %p90 = scmp.eq.s32.totalorder %s26, 3
      %p91 = por %p89, %p90
      %p93 = scmp.ne.s32.totalorder %s78, %s92
      %p94 = scmp.eq.s32.totalorder %s26, 0
      %p95 = por %p93, %p94
      %s97 = sadd.s32 %s96, 1
      %p100 = scmp.eq.s32.totalorder %s20, 3
      %p101 = scmp.ne.s32.totalorder %s96, %s98
      %p102 = scmp.eq.s32.totalorder %s20, 0
      %p103 = por %p101, %p102
      %p104 = scmp.ne.s32.totalorder %s96, %s98
      %p105 = scmp.eq.s32.totalorder %s25, 3
      %p106 = por %p104, %p105
      %p107 = scmp.ne.s32.totalorder %s98, %s99
      %p108 = scmp.eq.s32.totalorder %s25, 0
      %p109 = por %p107, %p108
      %p110 = scmp.ne.s32.totalorder %s98, %s99
      %p111 = scmp.eq.s32.totalorder %s26, 3
      %p112 = por %p110, %p111
      %p114 = scmp.ne.s32.totalorder %s99, %s113
      %p115 = scmp.eq.s32.totalorder %s26, 0
      %p116 = por %p114, %p115
      %s118 = sadd.s32 %s117, 1
      %p121 = scmp.eq.s32.totalorder %s20, 3
      %p122 = scmp.ne.s32.totalorder %s117, %s119
      %p123 = scmp.eq.s32.totalorder %s20, 0
      %p124 = por %p122, %p123
      %p125 = scmp.ne.s32.totalorder %s117, %s119
      %p126 = scmp.eq.s32.totalorder %s25, 3
      %p127 = por %p125, %p126
      %p128 = scmp.ne.s32.totalorder %s119, %s120
      %p129 = scmp.eq.s32.totalorder %s25, 0
      %p130 = por %p128, %p129
      %p131 = scmp.ne.s32.totalorder %s119, %s120
      %p132 = scmp.eq.s32.totalorder %s26, 3
      %p133 = por %p131, %p132
      %p135 = scmp.ne.s32.totalorder %s120, %s134
      %p136 = scmp.eq.s32.totalorder %s26, 0
      %p137 = por %p135, %p136
      %s139 = sadd.s32 %s138, 1
      %p142 = scmp.eq.s32.totalorder %s20, 3
      %p143 = scmp.ne.s32.totalorder %s138, %s140
      %p144 = scmp.eq.s32.totalorder %s20, 0
      %p145 = por %p143, %p144
      %p146 = scmp.ne.s32.totalorder %s138, %s140
      %p147 = scmp.eq.s32.totalorder %s25, 3
      %p148 = por %p146, %p147
      %p149 = scmp.ne.s32.totalorder %s140, %s141
      %p150 = scmp.eq.s32.totalorder %s25, 0
      %p151 = por %p149, %p150
      %p152 = scmp.ne.s32.totalorder %s140, %s141
      %p153 = scmp.eq.s32.totalorder %s26, 3
      %p154 = por %p152, %p153
      %p156 = scmp.ne.s32.totalorder %s141, %s155
      %p157 = scmp.eq.s32.totalorder %s26, 0
      %p158 = por %p156, %p157
      %s160 = sadd.s32 %s159, 1
      %p163 = scmp.eq.s32.totalorder %s20, 3
      %p164 = scmp.ne.s32.totalorder %s159, %s161
      %p165 = scmp.eq.s32.totalorder %s20, 0
      %p166 = por %p164, %p165
      %p167 = scmp.ne.s32.totalorder %s159, %s161
      %p168 = scmp.eq.s32.totalorder %s25, 3
      %p169 = por %p167, %p168
      %p170 = scmp.ne.s32.totalorder %s161, %s162
      %p171 = scmp.eq.s32.totalorder %s25, 0
      %p172 = por %p170, %p171
      %p173 = scmp.ne.s32.totalorder %s161, %s162
      %p174 = scmp.eq.s32.totalorder %s26, 3
      %p175 = por %p173, %p174
      %p177 = scmp.ne.s32.totalorder %s162, %s176
      %p178 = scmp.eq.s32.totalorder %s26, 0
      %p179 = por %p177, %p178
      %s181 = sadd.s32 %s180, 1
      %p184 = scmp.eq.s32.totalorder %s20, 3
      %p185 = scmp.ne.s32.totalorder %s180, %s182
      %p186 = scmp.eq.s32.totalorder %s20, 0
      %p187 = por %p185, %p186
      %p188 = scmp.ne.s32.totalorder %s180, %s182
      %p189 = scmp.eq.s32.totalorder %s25, 3
      %p190 = por %p188, %p189
      %p191 = scmp.ne.s32.totalorder %s182, %s183
      %p192 = scmp.eq.s32.totalorder %s25, 0
      %p193 = por %p191, %p192
      %p194 = scmp.ne.s32.totalorder %s182, %s183
      %p195 = scmp.eq.s32.totalorder %s26, 3
      %p196 = por %p194, %p195
      %p198 = scmp.ne.s32.totalorder %s183, %s197
      %p199 = scmp.eq.s32.totalorder %s26, 0
      %p200 = por %p198, %p199
      %s202 = sadd.s32 %s201, 1
      %p205 = scmp.eq.s32.totalorder %s20, 3
      %p206 = scmp.ne.s32.totalorder %s201, %s203
      %p207 = scmp.eq.s32.totalorder %s20, 0
      %p208 = por %p206, %p207
      %p209 = scmp.ne.s32.totalorder %s201, %s203
      %p210 = scmp.eq.s32.totalorder %s25, 3
      %p211 = por %p209, %p210
      %p212 = scmp.ne.s32.totalorder %s203, %s204
      %p213 = scmp.eq.s32.totalorder %s25, 0
      %p214 = por %p212, %p213
      %p215 = scmp.ne.s32.totalorder %s203, %s204
      %p216 = scmp.eq.s32.totalorder %s26, 3
      %p217 = por %p215, %p216
      %p219 = scmp.ne.s32.totalorder %s204, %s218
      %p220 = scmp.eq.s32.totalorder %s26, 0
      %p221 = por %p219, %p220
      %s222 = ssub.s32 %s20, %s27
      %p223 = scmp.eq.s32.totalorder %s222, 0
      %s225 = sadd.s32 %s224, 1
      %s226 = scalar_select %p223, %s224, %s225
      %p229 = pneg %p223
      %p230 = scmp.eq.s32.totalorder %s20, 3
      %p231 = por %p229, %p230
      %p232 = scmp.ne.s32.totalorder %s224, %s227
      %p233 = scmp.eq.s32.totalorder %s20, 0
      %p234 = por %p232, %p233
      %p235 = scmp.ne.s32.totalorder %s224, %s227
      %p236 = scmp.eq.s32.totalorder %s25, 3
      %p237 = por %p235, %p236
      %p238 = scmp.ne.s32.totalorder %s227, %s228
      %p239 = scmp.eq.s32.totalorder %s25, 0
      %p240 = por %p238, %p239
      %p241 = scmp.ne.s32.totalorder %s227, %s228
      %p242 = scmp.eq.s32.totalorder %s26, 3
      %p243 = por %p241, %p242
      %p245 = scmp.ne.s32.totalorder %s228, %s244
      %p246 = scmp.eq.s32.totalorder %s26, 0
      %p247 = por %p245, %p246
      %p248 = scmp.le.s32.totalorder 1, %s20
      %p249 = scmp.lt.s32.totalorder %s20, 5
      %p250 = pnand %p248, %p249
      %p251 = pneg %p250
      // Predicated region
      $region9: #{tpu_custom_call.1} parent=5 // pred_check
        _
      $region10: #{tpu_custom_call.1} parent=5 // pred_check_branch
        %253 = sbr.rel (%p250) target = $region12
      $region11: #{tpu_custom_call.1} parent=5 // pred_region
        %s254 = ssub.s32 %s20, 1
        // Predicated region
        $region13: #{tpu_custom_call.1} parent=11 // pred_check
          %p255 = pneg %p67
        $region14: #{tpu_custom_call.1} parent=11 // pred_check_branch
          %257 = sbr.rel (%p255) target = $region16
        $region15: #{tpu_custom_call.1} parent=11 // pred_region
          _
        $region16: #{tpu_custom_call.1} parent=11 // pred_fallthru
          _
        // Predicated region
        $region17: #{tpu_custom_call.1} parent=11 // pred_check
          %p258 = pneg %p88
        $region18: #{tpu_custom_call.1} parent=11 // pred_check_branch
          %260 = sbr.rel (%p258) target = $region20
        $region19: #{tpu_custom_call.1} parent=11 // pred_region
          _
        $region20: #{tpu_custom_call.1} parent=11 // pred_fallthru
          _
        // Predicated region
        $region21: #{tpu_custom_call.1} parent=11 // pred_check
          %p261 = pneg %p109
        $region22: #{tpu_custom_call.1} parent=11 // pred_check_branch
          %263 = sbr.rel (%p261) target = $region24
        $region23: #{tpu_custom_call.1} parent=11 // pred_region
          _
        $region24: #{tpu_custom_call.1} parent=11 // pred_fallthru
          _
        // Predicated region
        $region25: #{tpu_custom_call.1} parent=11 // pred_check
          %p264 = pneg %p130
        $region26: #{tpu_custom_call.1} parent=11 // pred_check_branch
          %266 = sbr.rel (%p264) target = $region28
        $region27: #{tpu_custom_call.1} parent=11 // pred_region
          _
        $region28: #{tpu_custom_call.1} parent=11 // pred_fallthru
          _
        // Predicated region
        $region29: #{tpu_custom_call.1} parent=11 // pred_check
          %p267 = pneg %p151
        $region30: #{tpu_custom_call.1} parent=11 // pred_check_branch
          %269 = sbr.rel (%p267) target = $region32
        $region31: #{tpu_custom_call.1} parent=11 // pred_region
          _
        $region32: #{tpu_custom_call.1} parent=11 // pred_fallthru
          _
        // Predicated region
        $region33: #{tpu_custom_call.1} parent=11 // pred_check
          %p270 = pneg %p172
        $region34: #{tpu_custom_call.1} parent=11 // pred_check_branch
          %272 = sbr.rel (%p270) target = $region36
        $region35: #{tpu_custom_call.1} parent=11 // pred_region
          _
        $region36: #{tpu_custom_call.1} parent=11 // pred_fallthru
          _
        // Predicated region
        $region37: #{tpu_custom_call.1} parent=11 // pred_check
          %p273 = pneg %p193
        $region38: #{tpu_custom_call.1} parent=11 // pred_check_branch
          %275 = sbr.rel (%p273) target = $region40
        $region39: #{tpu_custom_call.1} parent=11 // pred_region
          _
        $region40: #{tpu_custom_call.1} parent=11 // pred_fallthru
          _
        // Predicated region
        $region41: #{tpu_custom_call.1} parent=11 // pred_check
          %p276 = pneg %p214
        $region42: #{tpu_custom_call.1} parent=11 // pred_check_branch
          %278 = sbr.rel (%p276) target = $region44
        $region43: #{tpu_custom_call.1} parent=11 // pred_region
          _
        $region44: #{tpu_custom_call.1} parent=11 // pred_fallthru
          _
      $region12: #{tpu_custom_call.1} parent=5 // pred_fallthru
        _
      %p279 = scmp.lt.s32.totalorder %s20, 4
      // Predicated region
      $region45: #{tpu_custom_call.1} parent=5 // pred_check
        %p280 = pneg %p279
      $region46: #{tpu_custom_call.1} parent=5 // pred_check_branch
        %282 = sbr.rel (%p280) target = $region48
      $region47: #{tpu_custom_call.1} parent=5 // pred_region
        // Predicated region
        $region49: #{tpu_custom_call.1} parent=47 // pred_check
          %p283 = pneg %p40
        $region50: #{tpu_custom_call.1} parent=47 // pred_check_branch
          %285 = sbr.rel (%p283) target = $region52
        $region51: #{tpu_custom_call.1} parent=47 // pred_region
          %s286 = smul.u32 10, %s20
          %p287 = scmp.lt.s32.totalorder %s286, 39
          %s288 = scalar_select %p287, %s286, 39
          %s289 = smul.addr %s288, 2
          %s290 = scalar_lea.vmem %s0, %s289
          %s291 = smul.u32 10, %s20
        $region52: #{tpu_custom_call.1} parent=47 // pred_fallthru
          _
      $region48: #{tpu_custom_call.1} parent=5 // pred_fallthru
        _
      %p292 = scmp.le.s32.totalorder 1, %s20
      %p293 = scmp.lt.s32.totalorder %s20, 5
      %p294 = pnand %p292, %p293
      %p295 = pneg %p294
      // Predicated region
      $region53: #{tpu_custom_call.1} parent=5 // pred_check
        _
      $region54: #{tpu_custom_call.1} parent=5 // pred_check_branch
        %297 = sbr.rel (%p294) target = $region56
      $region55: #{tpu_custom_call.1} parent=5 // pred_region
        %s298 = ssub.s32 %s20, 1
        %s299 = smul.u32 10, %s25
        %p300 = scmp.lt.s32.totalorder %s299, 39
        %s301 = scalar_select %p300, %s299, 39
        %s302 = smul.addr %s301, 2
        %s303 = scalar_lea.vmem %s0, %s302
        %p304 = pneg %p46
        %p305 = pneg %p43
        %p306 = pneg %p67
        %p307 = pneg %p64
        %p308 = pneg %p88
        %p309 = pneg %p85
        %p310 = pneg %p109
        %p311 = pneg %p106
        %p312 = pneg %p130
        %p313 = pneg %p127
        %p314 = pneg %p151
        %p315 = pneg %p148
        %p316 = pneg %p172
        %p317 = pneg %p169
        %p318 = pneg %p193
        %p319 = pneg %p190
        %p320 = pneg %p214
        %p321 = pneg %p211
        %p322 = pneg %p240
        %p323 = pneg %p237
        %s324 = sand.u32 %s227, 1
        %s325 = scalar_lea.sflag [#allocation4], %s324
        %s326 = sand.u32 %s227, 1
        %s327 = smul.addr %s326, 10
        %s328 = scalar_lea.vmem [#allocation3], %s327
        %s329 = smul.u32 10, %s25
        %p330 = scmp.lt.s32.totalorder %s329, 39
        %s331 = scalar_select %p330, %s329, 39
        %s332 = smul.addr %s331, 2
        %s333 = scalar_lea.vmem %s0, %s332
        %s334 = smul.u32 10, %s25
        %s335 = smul.u32 10, %s25
        %v337 = vld [vmem:[%s333] sm:$0xff]
        %v338 = vld [vmem:[%s333 + $0x8] sm:$0xff]
        %v339 = vld [vmem:[%s333 + $0x10] sm:$0xf]
        %v340 = vld [vmem:[%s1] sm:$0xff]
        %v341 = vld [vmem:[%s1 + $0x8] sm:$0xff]
        %v342 = vld [vmem:[%s1 + $0x10] sm:$0xff]
        %v343 = vld [vmem:[%s1 + $0x18] sm:$0xff]
        %v344 = vld [vmem:[%s1 + $0x20] sm:$0xff]
        %v345 = vld [vmem:[%s1 + $0x28] sm:$0xff]
        %v346 = vld [vmem:[%s1 + $0x30] sm:$0x3]
        %v347 = vld [vmem:[%s3] sm:$0xf]
        %v348 = vld [vmem:[%s3 + $0x4] sm:$0xf]
        %v349 = vld [vmem:[%s3 + $0x8] sm:$0xf]
        %v350 = vld [vmem:[%s3 + $0xc] sm:$0xf]
        %v351 = vld [vmem:[%s3 + $0x10] sm:$0xf]
        %v352 = vld [vmem:[%s3 + $0x14] sm:$0xf]
        %v353 = vld [vmem:[%s3 + $0x18] sm:$0x1]
        %v354 = vld [vmem:[%s5] sm:$0xf]
        %v355 = vld [vmem:[%s5 + $0x4] sm:$0xf]
        %v356 = vld [vmem:[%s5 + $0x8] sm:$0xf]
        %v357 = vld [vmem:[%s5 + $0xc] sm:$0xf]
        %v358 = vld [vmem:[%s5 + $0x10] sm:$0xf]
        %v359 = vld [vmem:[%s5 + $0x14] sm:$0xf]
        %v360 = vld [vmem:[%s5 + $0x18] sm:$0x1]
        %362 = vset.pattern.permute.xlu0 0
        %363 = vperm.xlu0 %362, %v340
        %v364 = vpop.permute.xlu0 %363
        %367 = vset.pattern.permute.xlu0 0
        %368 = vperm.xlu0 %367, %v341
        %v369 = vpop.permute.xlu0 %368
        %372 = vset.pattern.permute.xlu0 0
        %373 = vperm.xlu0 %372, %v342
        %v374 = vpop.permute.xlu0 %373
        %377 = vset.pattern.permute.xlu0 0
        %378 = vperm.xlu0 %377, %v343
        %v379 = vpop.permute.xlu0 %378
        %382 = vset.pattern.permute.xlu0 0
        %383 = vperm.xlu0 %382, %v344
        %v384 = vpop.permute.xlu0 %383
        %387 = vset.pattern.permute.xlu0 0
        %388 = vperm.xlu0 %387, %v345
        %v389 = vpop.permute.xlu0 %388
        %392 = vset.pattern.permute.xlu0 0
        %393 = vperm.xlu0 %392, %v346
        %v394 = vpop.permute.xlu0 %393
        %v399 = vlaneseq
        %v400 = vshrl.u32 %v399, 7
        %v401 = vsub.s32 0, %v400
        %v402 = vrot.slane %v337, %v401
        %v403 = vlaneseq
        %v404 = vshrl.u32 %v403, 7
        %v405 = vsub.s32 2, %v404
        %v406 = vrot.slane %v337, %v405
        %v407 = vlaneseq
        %v408 = vshrl.u32 %v407, 7
        %v409 = vsub.s32 4, %v408
        %v410 = vrot.slane %v337, %v409
        %v411 = vlaneseq
        %v412 = vshrl.u32 %v411, 7
        %v413 = vsub.s32 6, %v412
        %v414 = vrot.slane %v337, %v413
        %v415 = vlaneseq
        %v416 = vshrl.u32 %v415, 7
        %v417 = vsub.s32 0, %v416
        %v418 = vrot.slane %v338, %v417
        %v419 = vlaneseq
        %v420 = vshrl.u32 %v419, 7
        %v421 = vsub.s32 2, %v420
        %v422 = vrot.slane %v338, %v421
        %v423 = vlaneseq
        %v424 = vshrl.u32 %v423, 7
        %v425 = vsub.s32 4, %v424
        %v426 = vrot.slane %v338, %v425
        %v427 = vlaneseq
        %v428 = vshrl.u32 %v427, 7
        %v429 = vsub.s32 6, %v428
        %v430 = vrot.slane %v338, %v429
        %v431 = vlaneseq
        %v432 = vshrl.u32 %v431, 7
        %v433 = vsub.s32 0, %v432
        %v434 = vrot.slane %v339, %v433
        %v435 = vlaneseq
        %v436 = vshrl.u32 %v435, 7
        %v437 = vsub.s32 2, %v436
        %v438 = vrot.slane %v339, %v437
        %v449 = vlaneseq
        %v450 = vshrl.u32 %v449, 7
        %v451 = vsub.s32 0, %v450
        %v452 = vrot.slane %v402, %v451
        %v453 = vlaneseq
        %v454 = vshrl.u32 %v453, 7
        %v455 = vsub.s32 0, %v454
        %v456 = vrot.slane %v406, %v455
        %v457 = vlaneseq
        %v458 = vshrl.u32 %v457, 7
        %v459 = vsub.s32 0, %v458
        %v460 = vrot.slane %v410, %v459
        %v461 = vlaneseq
        %v462 = vshrl.u32 %v461, 7
        %v463 = vsub.s32 0, %v462
        %v464 = vrot.slane %v414, %v463
        %v465 = vlaneseq
        %v466 = vshrl.u32 %v465, 7
        %v467 = vsub.s32 0, %v466
        %v468 = vrot.slane %v418, %v467
        %v469 = vlaneseq
        %v470 = vshrl.u32 %v469, 7
        %v471 = vsub.s32 0, %v470
        %v472 = vrot.slane %v422, %v471
        %v473 = vlaneseq
        %v474 = vshrl.u32 %v473, 7
        %v475 = vsub.s32 0, %v474
        %v476 = vrot.slane %v426, %v475
        %v477 = vlaneseq
        %v478 = vshrl.u32 %v477, 7
        %v479 = vsub.s32 0, %v478
        %v480 = vrot.slane %v430, %v479
        %v481 = vlaneseq
        %v482 = vshrl.u32 %v481, 7
        %v483 = vsub.s32 0, %v482
        %v484 = vrot.slane %v434, %v483
        %v485 = vlaneseq
        %v486 = vshrl.u32 %v485, 7
        %v487 = vsub.s32 0, %v486
        %v488 = vrot.slane %v438, %v487
        %v489 = vmul.f32 %v364, %v452
        %v490 = vmul.f32 %v364, %v456
        %v491 = vmul.f32 %v364, %v460
        %v492 = vmul.f32 %v364, %v464
        %v493 = vmul.f32 %v364, %v468
        %v494 = vmul.f32 %v364, %v472
        %v495 = vmul.f32 %v364, %v476
        %v496 = vmul.f32 %v364, %v480
        %v497 = vmul.f32 %v364, %v484
        %v498 = vmul.f32 %v364, %v488
        %v499 = vmul.f32 %v369, %v452
        %v500 = vmul.f32 %v369, %v456
        %v501 = vmul.f32 %v369, %v460
        %v502 = vmul.f32 %v369, %v464
        %v503 = vmul.f32 %v369, %v468
        %v504 = vmul.f32 %v369, %v472
        %v505 = vmul.f32 %v369, %v476
        %v506 = vmul.f32 %v369, %v480
        %v507 = vmul.f32 %v369, %v484
        %v508 = vmul.f32 %v369, %v488
        %v509 = vmul.f32 %v374, %v452
        %v510 = vmul.f32 %v374, %v456
        %v511 = vmul.f32 %v374, %v460
        %v512 = vmul.f32 %v374, %v464
        %v513 = vmul.f32 %v374, %v468
        %v514 = vmul.f32 %v374, %v472
        %v515 = vmul.f32 %v374, %v476
        %v516 = vmul.f32 %v374, %v480
        %v517 = vmul.f32 %v374, %v484
        %v518 = vmul.f32 %v374, %v488
        %v519 = vmul.f32 %v379, %v452
        %v520 = vmul.f32 %v379, %v456
        %v521 = vmul.f32 %v379, %v460
        %v522 = vmul.f32 %v379, %v464
        %v523 = vmul.f32 %v379, %v468
        %v524 = vmul.f32 %v379, %v472
        %v525 = vmul.f32 %v379, %v476
        %v526 = vmul.f32 %v379, %v480
        %v527 = vmul.f32 %v379, %v484
        %v528 = vmul.f32 %v379, %v488
        %v529 = vmul.f32 %v384, %v452
        %v530 = vmul.f32 %v384, %v456
        %v531 = vmul.f32 %v384, %v460
        %v532 = vmul.f32 %v384, %v464
        %v533 = vmul.f32 %v384, %v468
        %v534 = vmul.f32 %v384, %v472
        %v535 = vmul.f32 %v384, %v476
        %v536 = vmul.f32 %v384, %v480
        %v537 = vmul.f32 %v384, %v484
        %v538 = vmul.f32 %v384, %v488
        %v539 = vmul.f32 %v389, %v452
        %v540 = vmul.f32 %v389, %v456
        %v541 = vmul.f32 %v389, %v460
        %v542 = vmul.f32 %v389, %v464
        %v543 = vmul.f32 %v389, %v468
        %v544 = vmul.f32 %v389, %v472
        %v545 = vmul.f32 %v389, %v476
        %v546 = vmul.f32 %v389, %v480
        %v547 = vmul.f32 %v389, %v484
        %v548 = vmul.f32 %v389, %v488
        %v549 = vmul.f32 %v394, %v452
        %v550 = vmul.f32 %v394, %v456
        %v551 = vmul.f32 %v394, %v460
        %v552 = vmul.f32 %v394, %v464
        %v553 = vmul.f32 %v394, %v468
        %v554 = vmul.f32 %v394, %v472
        %v555 = vmul.f32 %v394, %v476
        %v556 = vmul.f32 %v394, %v480
        %v557 = vmul.f32 %v394, %v484
        %v558 = vmul.f32 %v394, %v488
        %559 = vset.pattern.permute.xlu0 1
        %560 = vperm.xlu0 %559, %v340
        %v561 = vpop.permute.xlu0 %560
        %563 = vset.pattern.permute.xlu0 1
        %564 = vperm.xlu0 %563, %v341
        %v565 = vpop.permute.xlu0 %564
        %567 = vset.pattern.permute.xlu0 1
        %568 = vperm.xlu0 %567, %v342
        %v569 = vpop.permute.xlu0 %568
        %571 = vset.pattern.permute.xlu0 1
        %572 = vperm.xlu0 %571, %v343
        %v573 = vpop.permute.xlu0 %572
        %575 = vset.pattern.permute.xlu0 1
        %576 = vperm.xlu0 %575, %v344
        %v577 = vpop.permute.xlu0 %576
        %579 = vset.pattern.permute.xlu0 1
        %580 = vperm.xlu0 %579, %v345
        %v581 = vpop.permute.xlu0 %580
        %583 = vset.pattern.permute.xlu0 1
        %584 = vperm.xlu0 %583, %v346
        %v585 = vpop.permute.xlu0 %584
        %v587 = vlaneseq
        %v588 = vshrl.u32 %v587, 7
        %v589 = vsub.s32 1, %v588
        %v590 = vrot.slane %v337, %v589
        %v591 = vlaneseq
        %v592 = vshrl.u32 %v591, 7
        %v593 = vsub.s32 3, %v592
        %v594 = vrot.slane %v337, %v593
        %v595 = vlaneseq
        %v596 = vshrl.u32 %v595, 7
        %v597 = vsub.s32 5, %v596
        %v598 = vrot.slane %v337, %v597
        %v599 = vlaneseq
        %v600 = vshrl.u32 %v599, 7
        %v601 = vsub.s32 7, %v600
        %v602 = vrot.slane %v337, %v601
        %v603 = vlaneseq
        %v604 = vshrl.u32 %v603, 7
        %v605 = vsub.s32 1, %v604
        %v606 = vrot.slane %v338, %v605
        %v607 = vlaneseq
        %v608 = vshrl.u32 %v607, 7
        %v609 = vsub.s32 3, %v608
        %v610 = vrot.slane %v338, %v609
        %v611 = vlaneseq
        %v612 = vshrl.u32 %v611, 7
        %v613 = vsub.s32 5, %v612
        %v614 = vrot.slane %v338, %v613
        %v615 = vlaneseq
        %v616 = vshrl.u32 %v615, 7
        %v617 = vsub.s32 7, %v616
        %v618 = vrot.slane %v338, %v617
        %v619 = vlaneseq
        %v620 = vshrl.u32 %v619, 7
        %v621 = vsub.s32 1, %v620
        %v622 = vrot.slane %v339, %v621
        %v623 = vlaneseq
        %v624 = vshrl.u32 %v623, 7
        %v625 = vsub.s32 3, %v624
        %v626 = vrot.slane %v339, %v625
        %v637 = vlaneseq
        %v638 = vshrl.u32 %v637, 7
        %v639 = vsub.s32 1, %v638
        %v640 = vrot.slane %v590, %v639
        %v641 = vlaneseq
        %v642 = vshrl.u32 %v641, 7
        %v643 = vsub.s32 1, %v642
        %v644 = vrot.slane %v594, %v643
        %v645 = vlaneseq
        %v646 = vshrl.u32 %v645, 7
        %v647 = vsub.s32 1, %v646
        %v648 = vrot.slane %v598, %v647
        %v649 = vlaneseq
        %v650 = vshrl.u32 %v649, 7
        %v651 = vsub.s32 1, %v650
        %v652 = vrot.slane %v602, %v651
        %v653 = vlaneseq
        %v654 = vshrl.u32 %v653, 7
        %v655 = vsub.s32 1, %v654
        %v656 = vrot.slane %v606, %v655
        %v657 = vlaneseq
        %v658 = vshrl.u32 %v657, 7
        %v659 = vsub.s32 1, %v658
        %v660 = vrot.slane %v610, %v659
        %v661 = vlaneseq
        %v662 = vshrl.u32 %v661, 7
        %v663 = vsub.s32 1, %v662
        %v664 = vrot.slane %v614, %v663
        %v665 = vlaneseq
        %v666 = vshrl.u32 %v665, 7
        %v667 = vsub.s32 1, %v666
        %v668 = vrot.slane %v618, %v667
        %v669 = vlaneseq
        %v670 = vshrl.u32 %v669, 7
        %v671 = vsub.s32 1, %v670
        %v672 = vrot.slane %v622, %v671
        %v673 = vlaneseq
        %v674 = vshrl.u32 %v673, 7
        %v675 = vsub.s32 1, %v674
        %v676 = vrot.slane %v626, %v675
        %v677 = vmul.f32 %v561, %v640
        %v678 = vmul.f32 %v561, %v644
        %v679 = vmul.f32 %v561, %v648
        %v680 = vmul.f32 %v561, %v652
        %v681 = vmul.f32 %v561, %v656
        %v682 = vmul.f32 %v561, %v660
        %v683 = vmul.f32 %v561, %v664
        %v684 = vmul.f32 %v561, %v668
        %v685 = vmul.f32 %v561, %v672
        %v686 = vmul.f32 %v561, %v676
        %v687 = vmul.f32 %v565, %v640
        %v688 = vmul.f32 %v565, %v644
        %v689 = vmul.f32 %v565, %v648
        %v690 = vmul.f32 %v565, %v652
        %v691 = vmul.f32 %v565, %v656
        %v692 = vmul.f32 %v565, %v660
        %v693 = vmul.f32 %v565, %v664
        %v694 = vmul.f32 %v565, %v668
        %v695 = vmul.f32 %v565, %v672
        %v696 = vmul.f32 %v565, %v676
        %v697 = vmul.f32 %v569, %v640
        %v698 = vmul.f32 %v569, %v644
        %v699 = vmul.f32 %v569, %v648
        %v700 = vmul.f32 %v569, %v652
        %v701 = vmul.f32 %v569, %v656
        %v702 = vmul.f32 %v569, %v660
        %v703 = vmul.f32 %v569, %v664
        %v704 = vmul.f32 %v569, %v668
        %v705 = vmul.f32 %v569, %v672
        %v706 = vmul.f32 %v569, %v676
        %v707 = vmul.f32 %v573, %v640
        %v708 = vmul.f32 %v573, %v644
        %v709 = vmul.f32 %v573, %v648
        %v710 = vmul.f32 %v573, %v652
        %v711 = vmul.f32 %v573, %v656
        %v712 = vmul.f32 %v573, %v660
        %v713 = vmul.f32 %v573, %v664
        %v714 = vmul.f32 %v573, %v668
        %v715 = vmul.f32 %v573, %v672
        %v716 = vmul.f32 %v573, %v676
        %v717 = vmul.f32 %v577, %v640
        %v718 = vmul.f32 %v577, %v644
        %v719 = vmul.f32 %v577, %v648
        %v720 = vmul.f32 %v577, %v652
        %v721 = vmul.f32 %v577, %v656
        %v722 = vmul.f32 %v577, %v660
        %v723 = vmul.f32 %v577, %v664
        %v724 = vmul.f32 %v577, %v668
        %v725 = vmul.f32 %v577, %v672
        %v726 = vmul.f32 %v577, %v676
        %v727 = vmul.f32 %v581, %v640
        %v728 = vmul.f32 %v581, %v644
        %v729 = vmul.f32 %v581, %v648
        %v730 = vmul.f32 %v581, %v652
        %v731 = vmul.f32 %v581, %v656
        %v732 = vmul.f32 %v581, %v660
        %v733 = vmul.f32 %v581, %v664
        %v734 = vmul.f32 %v581, %v668
        %v735 = vmul.f32 %v581, %v672
        %v736 = vmul.f32 %v581, %v676
        %v737 = vmul.f32 %v585, %v640
        %v738 = vmul.f32 %v585, %v644
        %v739 = vmul.f32 %v585, %v648
        %v740 = vmul.f32 %v585, %v652
        %v741 = vmul.f32 %v585, %v656
        %v742 = vmul.f32 %v585, %v660
        %v743 = vmul.f32 %v585, %v664
        %v744 = vmul.f32 %v585, %v668
        %v745 = vmul.f32 %v585, %v672
        %v746 = vmul.f32 %v585, %v676
        %v747 = vadd.f32 %v489, %v677
        %v748 = vadd.f32 %v490, %v678
        %v749 = vadd.f32 %v491, %v679
        %v750 = vadd.f32 %v492, %v680
        %v751 = vadd.f32 %v493, %v681
        %v752 = vadd.f32 %v494, %v682
        %v753 = vadd.f32 %v495, %v683
        %v754 = vadd.f32 %v496, %v684
        %v755 = vadd.f32 %v497, %v685
        %v756 = vadd.f32 %v498, %v686
        %v757 = vadd.f32 %v499, %v687
        %v758 = vadd.f32 %v500, %v688
        %v759 = vadd.f32 %v501, %v689
        %v760 = vadd.f32 %v502, %v690
        %v761 = vadd.f32 %v503, %v691
        %v762 = vadd.f32 %v504, %v692
        %v763 = vadd.f32 %v505, %v693
        %v764 = vadd.f32 %v506, %v694
        %v765 = vadd.f32 %v507, %v695
        %v766 = vadd.f32 %v508, %v696
        %v767 = vadd.f32 %v509, %v697
        %v768 = vadd.f32 %v510, %v698
        %v769 = vadd.f32 %v511, %v699
        %v770 = vadd.f32 %v512, %v700
        %v771 = vadd.f32 %v513, %v701
        %v772 = vadd.f32 %v514, %v702
        %v773 = vadd.f32 %v515, %v703
        %v774 = vadd.f32 %v516, %v704
        %v775 = vadd.f32 %v517, %v705
        %v776 = vadd.f32 %v518, %v706
        %v777 = vadd.f32 %v519, %v707
        %v778 = vadd.f32 %v520, %v708
        %v779 = vadd.f32 %v521, %v709
        %v780 = vadd.f32 %v522, %v710
        %v781 = vadd.f32 %v523, %v711
        %v782 = vadd.f32 %v524, %v712
        %v783 = vadd.f32 %v525, %v713
        %v784 = vadd.f32 %v526, %v714
        %v785 = vadd.f32 %v527, %v715
        %v786 = vadd.f32 %v528, %v716
        %v787 = vadd.f32 %v529, %v717
        %v788 = vadd.f32 %v530, %v718
        %v789 = vadd.f32 %v531, %v719
        %v790 = vadd.f32 %v532, %v720
        %v791 = vadd.f32 %v533, %v721
        %v792 = vadd.f32 %v534, %v722
        %v793 = vadd.f32 %v535, %v723
        %v794 = vadd.f32 %v536, %v724
        %v795 = vadd.f32 %v537, %v725
        %v796 = vadd.f32 %v538, %v726
        %v797 = vadd.f32 %v539, %v727
        %v798 = vadd.f32 %v540, %v728
        %v799 = vadd.f32 %v541, %v729
        %v800 = vadd.f32 %v542, %v730
        %v801 = vadd.f32 %v543, %v731
        %v802 = vadd.f32 %v544, %v732
        %v803 = vadd.f32 %v545, %v733
        %v804 = vadd.f32 %v546, %v734
        %v805 = vadd.f32 %v547, %v735
        %v806 = vadd.f32 %v548, %v736
        %v807 = vadd.f32 %v549, %v737
        %v808 = vadd.f32 %v550, %v738
        %v809 = vadd.f32 %v551, %v739
        %v810 = vadd.f32 %v552, %v740
        %v811 = vadd.f32 %v553, %v741
        %v812 = vadd.f32 %v554, %v742
        %v813 = vadd.f32 %v555, %v743
        %v814 = vadd.f32 %v556, %v744
        %v815 = vadd.f32 %v557, %v745
        %v816 = vadd.f32 %v558, %v746
        %v817 = vld [vmem:[%s2] sm:$0xff]
        %v818 = vld [vmem:[%s2 + $0x8] sm:$0xff]
        %v819 = vld [vmem:[%s2 + $0x10] sm:$0xff]
        %v820 = vld [vmem:[%s2 + $0x18] sm:$0xff]
        %v821 = vld [vmem:[%s2 + $0x20] sm:$0xff]
        %v822 = vld [vmem:[%s2 + $0x28] sm:$0xff]
        %v823 = vld [vmem:[%s2 + $0x30] sm:$0x3]
        %825 = vset.pattern.permute.xlu0 0
        %826 = vperm.xlu0 %825, %v817
        %v827 = vpop.permute.xlu0 %826
        %830 = vset.pattern.permute.xlu0 0
        %831 = vperm.xlu0 %830, %v818
        %v832 = vpop.permute.xlu0 %831
        %835 = vset.pattern.permute.xlu0 0
        %836 = vperm.xlu0 %835, %v819
        %v837 = vpop.permute.xlu0 %836
        %840 = vset.pattern.permute.xlu0 0
        %841 = vperm.xlu0 %840, %v820
        %v842 = vpop.permute.xlu0 %841
        %845 = vset.pattern.permute.xlu0 0
        %846 = vperm.xlu0 %845, %v821
        %v847 = vpop.permute.xlu0 %846
        %850 = vset.pattern.permute.xlu0 0
        %851 = vperm.xlu0 %850, %v822
        %v852 = vpop.permute.xlu0 %851
        %855 = vset.pattern.permute.xlu0 0
        %856 = vperm.xlu0 %855, %v823
        %v857 = vpop.permute.xlu0 %856
        %v859 = vadd.f32 %v747, %v827
        %v860 = vadd.f32 %v748, %v827
        %v861 = vadd.f32 %v749, %v827
        %v862 = vadd.f32 %v750, %v827
        %v863 = vadd.f32 %v751, %v827
        %v864 = vadd.f32 %v752, %v827
        %v865 = vadd.f32 %v753, %v827
        %v866 = vadd.f32 %v754, %v827
        %v867 = vadd.f32 %v755, %v827
        %v868 = vadd.f32 %v756, %v827
        %v869 = vadd.f32 %v757, %v832
        %v870 = vadd.f32 %v758, %v832
        %v871 = vadd.f32 %v759, %v832
        %v872 = vadd.f32 %v760, %v832
        %v873 = vadd.f32 %v761, %v832
        %v874 = vadd.f32 %v762, %v832
        %v875 = vadd.f32 %v763, %v832
        %v876 = vadd.f32 %v764, %v832
        %v877 = vadd.f32 %v765, %v832
        %v878 = vadd.f32 %v766, %v832
        %v879 = vadd.f32 %v767, %v837
        %v880 = vadd.f32 %v768, %v837
        %v881 = vadd.f32 %v769, %v837
        %v882 = vadd.f32 %v770, %v837
        %v883 = vadd.f32 %v771, %v837
        %v884 = vadd.f32 %v772, %v837
        %v885 = vadd.f32 %v773, %v837
        %v886 = vadd.f32 %v774, %v837
        %v887 = vadd.f32 %v775, %v837
        %v888 = vadd.f32 %v776, %v837
        %v889 = vadd.f32 %v777, %v842
        %v890 = vadd.f32 %v778, %v842
        %v891 = vadd.f32 %v779, %v842
        %v892 = vadd.f32 %v780, %v842
        %v893 = vadd.f32 %v781, %v842
        %v894 = vadd.f32 %v782, %v842
        %v895 = vadd.f32 %v783, %v842
        %v896 = vadd.f32 %v784, %v842
        %v897 = vadd.f32 %v785, %v842
        %v898 = vadd.f32 %v786, %v842
        %v899 = vadd.f32 %v787, %v847
        %v900 = vadd.f32 %v788, %v847
        %v901 = vadd.f32 %v789, %v847
        %v902 = vadd.f32 %v790, %v847
        %v903 = vadd.f32 %v791, %v847
        %v904 = vadd.f32 %v792, %v847
        %v905 = vadd.f32 %v793, %v847
        %v906 = vadd.f32 %v794, %v847
        %v907 = vadd.f32 %v795, %v847
        %v908 = vadd.f32 %v796, %v847
        %v909 = vadd.f32 %v797, %v852
        %v910 = vadd.f32 %v798, %v852
        %v911 = vadd.f32 %v799, %v852
        %v912 = vadd.f32 %v800, %v852
        %v913 = vadd.f32 %v801, %v852
        %v914 = vadd.f32 %v802, %v852
        %v915 = vadd.f32 %v803, %v852
        %v916 = vadd.f32 %v804, %v852
        %v917 = vadd.f32 %v805, %v852
        %v918 = vadd.f32 %v806, %v852
        %v919 = vadd.f32 %v807, %v857
        %v920 = vadd.f32 %v808, %v857
        %v921 = vadd.f32 %v809, %v857
        %v922 = vadd.f32 %v810, %v857
        %v923 = vadd.f32 %v811, %v857
        %v924 = vadd.f32 %v812, %v857
        %v925 = vadd.f32 %v813, %v857
        %v926 = vadd.f32 %v814, %v857
        %v927 = vadd.f32 %v815, %v857
        %v928 = vadd.f32 %v816, %v857
        %v929 = vtanh.pop %v859
        %v930 = vtanh.pop %v860
        %v931 = vtanh.pop %v861
        %v932 = vtanh.pop %v862
        %v933 = vtanh.pop %v863
        %v934 = vtanh.pop %v864
        %v935 = vtanh.pop %v865
        %v936 = vtanh.pop %v866
        %v937 = vtanh.pop %v867
        %v938 = vtanh.pop %v868
        %v939 = vtanh.pop %v869
        %v940 = vtanh.pop %v870
        %v941 = vtanh.pop %v871
        %v942 = vtanh.pop %v872
        %v943 = vtanh.pop %v873
        %v944 = vtanh.pop %v874
        %v945 = vtanh.pop %v875
        %v946 = vtanh.pop %v876
        %v947 = vtanh.pop %v877
        %v948 = vtanh.pop %v878
        %v949 = vtanh.pop %v879
        %v950 = vtanh.pop %v880
        %v951 = vtanh.pop %v881
        %v952 = vtanh.pop %v882
        %v953 = vtanh.pop %v883
        %v954 = vtanh.pop %v884
        %v955 = vtanh.pop %v885
        %v956 = vtanh.pop %v886
        %v957 = vtanh.pop %v887
        %v958 = vtanh.pop %v888
        %v959 = vtanh.pop %v889
        %v960 = vtanh.pop %v890
        %v961 = vtanh.pop %v891
        %v962 = vtanh.pop %v892
        %v963 = vtanh.pop %v893
        %v964 = vtanh.pop %v894
        %v965 = vtanh.pop %v895
        %v966 = vtanh.pop %v896
        %v967 = vtanh.pop %v897
        %v968 = vtanh.pop %v898
        %v969 = vtanh.pop %v899
        %v970 = vtanh.pop %v900
        %v971 = vtanh.pop %v901
        %v972 = vtanh.pop %v902
        %v973 = vtanh.pop %v903
        %v974 = vtanh.pop %v904
        %v975 = vtanh.pop %v905
        %v976 = vtanh.pop %v906
        %v977 = vtanh.pop %v907
        %v978 = vtanh.pop %v908
        %v979 = vtanh.pop %v909
        %v980 = vtanh.pop %v910
        %v981 = vtanh.pop %v911
        %v982 = vtanh.pop %v912
        %v983 = vtanh.pop %v913
        %v984 = vtanh.pop %v914
        %v985 = vtanh.pop %v915
        %v986 = vtanh.pop %v916
        %v987 = vtanh.pop %v917
        %v988 = vtanh.pop %v918
        %v989 = vtanh.pop %v919
        %v990 = vtanh.pop %v920
        %v991 = vtanh.pop %v921
        %v992 = vtanh.pop %v922
        %v993 = vtanh.pop %v923
        %v994 = vtanh.pop %v924
        %v995 = vtanh.pop %v925
        %v996 = vtanh.pop %v926
        %v997 = vtanh.pop %v927
        %v998 = vtanh.pop %v928
        %v999 = vpack.c.bf16 %v939, %v929
        %v1000 = vpack.c.bf16 %v940, %v930
        %v1001 = vpack.c.bf16 %v941, %v931
        %v1002 = vpack.c.bf16 %v942, %v932
        %v1003 = vpack.c.bf16 %v943, %v933
        %v1004 = vpack.c.bf16 %v944, %v934
        %v1005 = vpack.c.bf16 %v945, %v935
        %v1006 = vpack.c.bf16 %v946, %v936
        %v1007 = vpack.c.bf16 %v947, %v937
        %v1008 = vpack.c.bf16 %v948, %v938
        %v1009 = vpack.c.bf16 %v959, %v949
        %v1010 = vpack.c.bf16 %v960, %v950
        %v1011 = vpack.c.bf16 %v961, %v951
        %v1012 = vpack.c.bf16 %v962, %v952
        %v1013 = vpack.c.bf16 %v963, %v953
        %v1014 = vpack.c.bf16 %v964, %v954
        %v1015 = vpack.c.bf16 %v965, %v955
        %v1016 = vpack.c.bf16 %v966, %v956
        %v1017 = vpack.c.bf16 %v967, %v957
        %v1018 = vpack.c.bf16 %v968, %v958
        %v1019 = vpack.c.bf16 %v979, %v969
        %v1020 = vpack.c.bf16 %v980, %v970
        %v1021 = vpack.c.bf16 %v981, %v971
        %v1022 = vpack.c.bf16 %v982, %v972
        %v1023 = vpack.c.bf16 %v983, %v973
        %v1024 = vpack.c.bf16 %v984, %v974
        %v1025 = vpack.c.bf16 %v985, %v975
        %v1026 = vpack.c.bf16 %v986, %v976
        %v1027 = vpack.c.bf16 %v987, %v977
        %v1028 = vpack.c.bf16 %v988, %v978
        %v1029 = vpack.c.bf16 %v989, %v989
        %v1030 = vpack.c.bf16 %v990, %v990
        %v1031 = vpack.c.bf16 %v991, %v991
        %v1032 = vpack.c.bf16 %v992, %v992
        %v1033 = vpack.c.bf16 %v993, %v993
        %v1034 = vpack.c.bf16 %v994, %v994
        %v1035 = vpack.c.bf16 %v995, %v995
        %v1036 = vpack.c.bf16 %v996, %v996
        %v1037 = vpack.c.bf16 %v997, %v997
        %v1038 = vpack.c.bf16 %v998, %v998
        %v1039 = vld [vmem:[%s4] sm:$0xff]
        %v1040 = vld [vmem:[%s4 + $0x8] sm:$0xff]
        %v1041 = vld [vmem:[%s4 + $0x10] sm:$0xff]
        %v1042 = vld [vmem:[%s4 + $0x18] sm:$0xff]
        %v1043 = vld [vmem:[%s4 + $0x20] sm:$0xff]
        %v1044 = vld [vmem:[%s4 + $0x28] sm:$0xff]
        %v1045 = vld [vmem:[%s4 + $0x30] sm:$0x3]
        %1047 = vset.pattern.permute.xlu0 0
        %1048 = vperm.xlu0 %1047, %v1039
        %v1049 = vpop.permute.xlu0 %1048
        %1052 = vset.pattern.permute.xlu0 0
        %1053 = vperm.xlu0 %1052, %v1040
        %v1054 = vpop.permute.xlu0 %1053
        %1057 = vset.pattern.permute.xlu0 0
        %1058 = vperm.xlu0 %1057, %v1041
        %v1059 = vpop.permute.xlu0 %1058
        %1062 = vset.pattern.permute.xlu0 0
        %1063 = vperm.xlu0 %1062, %v1042
        %v1064 = vpop.permute.xlu0 %1063
        %1067 = vset.pattern.permute.xlu0 0
        %1068 = vperm.xlu0 %1067, %v1043
        %v1069 = vpop.permute.xlu0 %1068
        %1072 = vset.pattern.permute.xlu0 0
        %1073 = vperm.xlu0 %1072, %v1044
        %v1074 = vpop.permute.xlu0 %1073
        %1077 = vset.pattern.permute.xlu0 0
        %1078 = vperm.xlu0 %1077, %v1045
        %v1079 = vpop.permute.xlu0 %1078
        %v1088 = vunpack.c.l.b16 %v347
        %v1089 = vunpack.c.l.b16 %v348
        %v1090 = vunpack.c.l.b16 %v349
        %v1091 = vunpack.c.l.b16 %v350
        %v1092 = vunpack.c.l.b16 %v351
        %v1093 = vunpack.c.l.b16 %v352
        %v1094 = vunpack.c.l.b16 %v353
        %v1095 = vpack.c.b16 %v1089, %v1088
        %v1096 = vpack.c.b16 %v1091, %v1090
        %v1097 = vpack.c.b16 %v1093, %v1092
        %v1098 = vpack.c.b16 %v1094, %v1094
        %vm1099 = vcmask 408576
        %v1101 = vsel %vm1099, %v1095, 0
        %v1104 = vsel %vm1099, %v1096, 0
        %v1107 = vsel %vm1099, %v1097, 0
        %v1110 = vsel %vm1099, %v1098, 0
        %vm1112 = vcmask 1040384
        %v1114 = vsel %vm1112, %v1029, 0
        %v1117 = vsel %vm1112, %v1030, 0
        %v1120 = vsel %vm1112, %v1031, 0
        %v1123 = vsel %vm1112, %v1032, 0
        %v1126 = vsel %vm1112, %v1033, 0
        %v1129 = vsel %vm1112, %v1034, 0
        %v1132 = vsel %vm1112, %v1035, 0
        %v1135 = vsel %vm1112, %v1036, 0
        %v1138 = vsel %vm1112, %v1037, 0
        %v1141 = vsel %vm1112, %v1038, 0
        %1143 = vmatprep.subr.bf16.mxu0 %v1000
        %1144 = vmatpush1.bf16.msra.mxu0 %v999
        %1145 = vmatprep.subr.bf16.mxu0 %v1010
        %1146 = vmatpush1.bf16.msra.mxu0 %v1009
        %1147 = vmatprep.subr.bf16.mxu0 %v1020
        %1148 = vmatpush1.bf16.msra.mxu0 %v1019
        %1149 = vmatprep.subr.bf16.mxu0 %v1117
        %1150 = vmatpush1.bf16.msra.mxu0 %v1114
        %1151 = vmatprep.subr.bf16.mxu0 0
        %1152 = vmatpush1.bf16.msra.mxu0 0
        %1153 = vmatprep.subr.bf16.mxu0 0
        %1154 = vmatpush1.bf16.msra.mxu0 0
        %1155 = vmatprep.subr.bf16.mxu0 0
        %1156 = vmatpush1.bf16.msra.mxu0 0
        %1157 = vmatprep.subr.bf16.mxu0 0
        %1158 = vmatpush1.bf16.msra.mxu0 0
        %1159 = vmatprep.subr.bf16.mxu0 0
        %1160 = vmatpush1.bf16.msra.mxu0 0
        %1161 = vmatprep.subr.bf16.mxu0 0
        %1162 = vmatpush1.bf16.msra.mxu0 0
        %1163 = vmatprep.subr.bf16.mxu0 0
        %1164 = vmatpush1.bf16.msra.mxu0 0
        %1165 = vmatprep.subr.bf16.mxu0 0
        %1166 = vmatpush1.bf16.msra.mxu0 0
        %1167 = vmatprep.subr.bf16.mxu0 0
        %1168 = vmatpush1.bf16.msra.mxu0 0
        %1169 = vmatprep.subr.bf16.mxu0 0
        %1170 = vmatpush1.bf16.msra.mxu0 0
        %1171 = vmatprep.subr.bf16.mxu0 0
        %1172 = vmatpush1.bf16.msra.mxu0 0
        %1173 = vmatprep.subr.bf16.mxu0 0
        %1174 = vmatpush1.bf16.msra.mxu0 0
        %1175 = vmatprep.mubr.bf16.mxu0 0
        %1176 = vmatmul.mubr.bf16.gmra.mrb[0].mxu0 %v1101
        %v1177 = vpop.f32.mrb[0].mxu0
        %v1178 = vadd.f32 %v1049, %v1177
        %v1179 = vpop.f32.mrb[0].mxu0
        %v1180 = vadd.f32 %v1049, %v1179
        %v1181 = vpop.f32.mrb[0].mxu0
        %v1182 = vadd.f32 %v1054, %v1181
        %v1183 = vpop.f32.mrb[0].mxu0
        %v1184 = vadd.f32 %v1054, %v1183
        %1185 = vmatprep.mubr.bf16.mxu0 0
        %1186 = vmatmul.mubr.bf16.gmra.mrb[0].mxu0 %v1104
        %v1187 = vpop.f32.mrb[0].mxu0
        %v1188 = vadd.f32 %v1059, %v1187
        %v1189 = vpop.f32.mrb[0].mxu0
        %v1190 = vadd.f32 %v1059, %v1189
        %v1191 = vpop.f32.mrb[0].mxu0
        %v1192 = vadd.f32 %v1064, %v1191
        %v1193 = vpop.f32.mrb[0].mxu0
        %v1194 = vadd.f32 %v1064, %v1193
        %1195 = vmatprep.mubr.bf16.mxu0 0
        %1196 = vmatmul.mubr.bf16.gmra.mrb[0].mxu0 %v1107
        %v1197 = vpop.f32.mrb[0].mxu0
        %v1198 = vadd.f32 %v1069, %v1197
        %v1199 = vpop.f32.mrb[0].mxu0
        %v1200 = vadd.f32 %v1069, %v1199
        %v1201 = vpop.f32.mrb[0].mxu0
        %v1202 = vadd.f32 %v1074, %v1201
        %v1203 = vpop.f32.mrb[0].mxu0
        %v1204 = vadd.f32 %v1074, %v1203
        %1205 = vmatprep.mubr.bf16.mxu0 0
        %1206 = vmatmul.mubr.bf16.gmra.mrb[0].mxu0 %v1110
        %v1207 = vpop.f32.mrb[0].mxu0
        %v1208 = vadd.f32 %v1079, %v1207
        %v1209 = vpop.f32.mrb[0].mxu0
        %v1210 = vadd.f32 %v1079, %v1209
        %v1211 = vpop.f32.mrb[0].mxu0
        %v1212 = vpop.f32.mrb[0].mxu0
        %1213 = vdwg.mxu0
        %1214 = vmatprep.subr.bf16.mxu0 %v1002
        %1215 = vmatpush1.bf16.msra.mxu0 %v1001
        %1216 = vmatprep.subr.bf16.mxu0 %v1012
        %1217 = vmatpush1.bf16.msra.mxu0 %v1011
        %1218 = vmatprep.subr.bf16.mxu0 %v1022
        %1219 = vmatpush1.bf16.msra.mxu0 %v1021
        %1220 = vmatprep.subr.bf16.mxu0 %v1123
        %1221 = vmatpush1.bf16.msra.mxu0 %v1120
        %1222 = vmatprep.subr.bf16.mxu0 0
        %1223 = vmatpush1.bf16.msra.mxu0 0
        %1224 = vmatprep.subr.bf16.mxu0 0
        %1225 = vmatpush1.bf16.msra.mxu0 0
        %1226 = vmatprep.subr.bf16.mxu0 0
        %1227 = vmatpush1.bf16.msra.mxu0 0
        %1228 = vmatprep.subr.bf16.mxu0 0
        %1229 = vmatpush1.bf16.msra.mxu0 0
        %1230 = vmatprep.subr.bf16.mxu0 0
        %1231 = vmatpush1.bf16.msra.mxu0 0
        %1232 = vmatprep.subr.bf16.mxu0 0
        %1233 = vmatpush1.bf16.msra.mxu0 0
        %1234 = vmatprep.subr.bf16.mxu0 0
        %1235 = vmatpush1.bf16.msra.mxu0 0
        %1236 = vmatprep.subr.bf16.mxu0 0
        %1237 = vmatpush1.bf16.msra.mxu0 0
        %1238 = vmatprep.subr.bf16.mxu0 0
        %1239 = vmatpush1.bf16.msra.mxu0 0
        %1240 = vmatprep.subr.bf16.mxu0 0
        %1241 = vmatpush1.bf16.msra.mxu0 0
        %1242 = vmatprep.subr.bf16.mxu0 0
        %1243 = vmatpush1.bf16.msra.mxu0 0
        %1244 = vmatprep.subr.bf16.mxu0 0
        %1245 = vmatpush1.bf16.msra.mxu0 0
        %1246 = vmatprep.mubr.bf16.mxu0 0
        %1247 = vmatmul.mubr.bf16.gmra.mrb[0].mxu0 %v1101
        %v1248 = vpop.f32.mrb[0].mxu0
        %v1249 = vadd.f32 %v1049, %v1248
        %v1250 = vpop.f32.mrb[0].mxu0
        %v1251 = vadd.f32 %v1049, %v1250
        %v1252 = vpop.f32.mrb[0].mxu0
        %v1253 = vadd.f32 %v1054, %v1252
        %v1254 = vpop.f32.mrb[0].mxu0
        %v1255 = vadd.f32 %v1054, %v1254
        %1256 = vmatprep.mubr.bf16.mxu0 0
        %1257 = vmatmul.mubr.bf16.gmra.mrb[0].mxu0 %v1104
        %v1258 = vpop.f32.mrb[0].mxu0
        %v1259 = vadd.f32 %v1059, %v1258
        %v1260 = vpop.f32.mrb[0].mxu0
        %v1261 = vadd.f32 %v1059, %v1260
        %v1262 = vpop.f32.mrb[0].mxu0
        %v1263 = vadd.f32 %v1064, %v1262
        %v1264 = vpop.f32.mrb[0].mxu0
        %v1265 = vadd.f32 %v1064, %v1264
        %1266 = vmatprep.mubr.bf16.mxu0 0
        %1267 = vmatmul.mubr.bf16.gmra.mrb[0].mxu0 %v1107
        %v1268 = vpop.f32.mrb[0].mxu0
        %v1269 = vadd.f32 %v1069, %v1268
        %v1270 = vpop.f32.mrb[0].mxu0
        %v1271 = vadd.f32 %v1069, %v1270
        %v1272 = vpop.f32.mrb[0].mxu0
        %v1273 = vadd.f32 %v1074, %v1272
        %v1274 = vpop.f32.mrb[0].mxu0
        %v1275 = vadd.f32 %v1074, %v1274
        %1276 = vmatprep.mubr.bf16.mxu0 0
        %1277 = vmatmul.mubr.bf16.gmra.mrb[0].mxu0 %v1110
        %v1278 = vpop.f32.mrb[0].mxu0
        %v1279 = vadd.f32 %v1079, %v1278
        %v1280 = vpop.f32.mrb[0].mxu0
        %v1281 = vadd.f32 %v1079, %v1280
        %v1282 = vpop.f32.mrb[0].mxu0
        %v1283 = vpop.f32.mrb[0].mxu0
        %1284 = vdwg.mxu0
        %1285 = vmatprep.subr.bf16.mxu0 %v1004
        %1286 = vmatpush1.bf16.msra.mxu0 %v1003
        %1287 = vmatprep.subr.bf16.mxu0 %v1014
        %1288 = vmatpush1.bf16.msra.mxu0 %v1013
        %1289 = vmatprep.subr.bf16.mxu0 %v1024
        %1290 = vmatpush1.bf16.msra.mxu0 %v1023
        %1291 = vmatprep.subr.bf16.mxu0 %v1129
        %1292 = vmatpush1.bf16.msra.mxu0 %v1126
        %1293 = vmatprep.subr.bf16.mxu0 0
        %1294 = vmatpush1.bf16.msra.mxu0 0
        %1295 = vmatprep.subr.bf16.mxu0 0
        %1296 = vmatpush1.bf16.msra.mxu0 0
        %1297 = vmatprep.subr.bf16.mxu0 0
        %1298 = vmatpush1.bf16.msra.mxu0 0
        %1299 = vmatprep.subr.bf16.mxu0 0
        %1300 = vmatpush1.bf16.msra.mxu0 0
        %1301 = vmatprep.subr.bf16.mxu0 0
        %1302 = vmatpush1.bf16.msra.mxu0 0
        %1303 = vmatprep.subr.bf16.mxu0 0
        %1304 = vmatpush1.bf16.msra.mxu0 0
        %1305 = vmatprep.subr.bf16.mxu0 0
        %1306 = vmatpush1.bf16.msra.mxu0 0
        %1307 = vmatprep.subr.bf16.mxu0 0
        %1308 = vmatpush1.bf16.msra.mxu0 0
        %1309 = vmatprep.subr.bf16.mxu0 0
        %1310 = vmatpush1.bf16.msra.mxu0 0
        %1311 = vmatprep.subr.bf16.mxu0 0
        %1312 = vmatpush1.bf16.msra.mxu0 0
        %1313 = vmatprep.subr.bf16.mxu0 0
        %1314 = vmatpush1.bf16.msra.mxu0 0
        %1315 = vmatprep.subr.bf16.mxu0 0
        %1316 = vmatpush1.bf16.msra.mxu0 0
        %1317 = vmatprep.mubr.bf16.mxu0 0
        %1318 = vmatmul.mubr.bf16.gmra.mrb[0].mxu0 %v1101
        %v1319 = vpop.f32.mrb[0].mxu0
        %v1320 = vadd.f32 %v1049, %v1319
        %v1321 = vpop.f32.mrb[0].mxu0
        %v1322 = vadd.f32 %v1049, %v1321
        %v1323 = vpop.f32.mrb[0].mxu0
        %v1324 = vadd.f32 %v1054, %v1323
        %v1325 = vpop.f32.mrb[0].mxu0
        %v1326 = vadd.f32 %v1054, %v1325
        %1327 = vmatprep.mubr.bf16.mxu0 0
        %1328 = vmatmul.mubr.bf16.gmra.mrb[0].mxu0 %v1104
        %v1329 = vpop.f32.mrb[0].mxu0
        %v1330 = vadd.f32 %v1059, %v1329
        %v1331 = vpop.f32.mrb[0].mxu0
        %v1332 = vadd.f32 %v1059, %v1331
        %v1333 = vpop.f32.mrb[0].mxu0
        %v1334 = vadd.f32 %v1064, %v1333
        %v1335 = vpop.f32.mrb[0].mxu0
        %v1336 = vadd.f32 %v1064, %v1335
        %1337 = vmatprep.mubr.bf16.mxu0 0
        %1338 = vmatmul.mubr.bf16.gmra.mrb[0].mxu0 %v1107
        %v1339 = vpop.f32.mrb[0].mxu0
        %v1340 = vadd.f32 %v1069, %v1339
        %v1341 = vpop.f32.mrb[0].mxu0
        %v1342 = vadd.f32 %v1069, %v1341
        %v1343 = vpop.f32.mrb[0].mxu0
        %v1344 = vadd.f32 %v1074, %v1343
        %v1345 = vpop.f32.mrb[0].mxu0
        %v1346 = vadd.f32 %v1074, %v1345
        %1347 = vmatprep.mubr.bf16.mxu0 0
        %1348 = vmatmul.mubr.bf16.gmra.mrb[0].mxu0 %v1110
        %v1349 = vpop.f32.mrb[0].mxu0
        %v1350 = vadd.f32 %v1079, %v1349
        %v1351 = vpop.f32.mrb[0].mxu0
        %v1352 = vadd.f32 %v1079, %v1351
        %v1353 = vpop.f32.mrb[0].mxu0
        %v1354 = vpop.f32.mrb[0].mxu0
        %1355 = vdwg.mxu0
        %1356 = vmatprep.subr.bf16.mxu0 %v1006
        %1357 = vmatpush1.bf16.msra.mxu0 %v1005
        %1358 = vmatprep.subr.bf16.mxu0 %v1016
        %1359 = vmatpush1.bf16.msra.mxu0 %v1015
        %1360 = vmatprep.subr.bf16.mxu0 %v1026
        %1361 = vmatpush1.bf16.msra.mxu0 %v1025
        %1362 = vmatprep.subr.bf16.mxu0 %v1135
        %1363 = vmatpush1.bf16.msra.mxu0 %v1132
        %1364 = vmatprep.subr.bf16.mxu0 0
        %1365 = vmatpush1.bf16.msra.mxu0 0
        %1366 = vmatprep.subr.bf16.mxu0 0
        %1367 = vmatpush1.bf16.msra.mxu0 0
        %1368 = vmatprep.subr.bf16.mxu0 0
        %1369 = vmatpush1.bf16.msra.mxu0 0
        %1370 = vmatprep.subr.bf16.mxu0 0
        %1371 = vmatpush1.bf16.msra.mxu0 0
        %1372 = vmatprep.subr.bf16.mxu0 0
        %1373 = vmatpush1.bf16.msra.mxu0 0
        %1374 = vmatprep.subr.bf16.mxu0 0
        %1375 = vmatpush1.bf16.msra.mxu0 0
        %1376 = vmatprep.subr.bf16.mxu0 0
        %1377 = vmatpush1.bf16.msra.mxu0 0
        %1378 = vmatprep.subr.bf16.mxu0 0
        %1379 = vmatpush1.bf16.msra.mxu0 0
        %1380 = vmatprep.subr.bf16.mxu0 0
        %1381 = vmatpush1.bf16.msra.mxu0 0
        %1382 = vmatprep.subr.bf16.mxu0 0
        %1383 = vmatpush1.bf16.msra.mxu0 0
        %1384 = vmatprep.subr.bf16.mxu0 0
        %1385 = vmatpush1.bf16.msra.mxu0 0
        %1386 = vmatprep.subr.bf16.mxu0 0
        %1387 = vmatpush1.bf16.msra.mxu0 0
        %1388 = vmatprep.mubr.bf16.mxu0 0
        %1389 = vmatmul.mubr.bf16.gmra.mrb[0].mxu0 %v1101
        %v1390 = vpop.f32.mrb[0].mxu0
        %v1391 = vadd.f32 %v1049, %v1390
        %v1392 = vpop.f32.mrb[0].mxu0
        %v1393 = vadd.f32 %v1049, %v1392
        %v1394 = vpop.f32.mrb[0].mxu0
        %v1395 = vadd.f32 %v1054, %v1394
        %v1396 = vpop.f32.mrb[0].mxu0
        %v1397 = vadd.f32 %v1054, %v1396
        %1398 = vmatprep.mubr.bf16.mxu0 0
        %1399 = vmatmul.mubr.bf16.gmra.mrb[0].mxu0 %v1104
        %v1400 = vpop.f32.mrb[0].mxu0
        %v1401 = vadd.f32 %v1059, %v1400
        %v1402 = vpop.f32.mrb[0].mxu0
        %v1403 = vadd.f32 %v1059, %v1402
        %v1404 = vpop.f32.mrb[0].mxu0
        %v1405 = vadd.f32 %v1064, %v1404
        %v1406 = vpop.f32.mrb[0].mxu0
        %v1407 = vadd.f32 %v1064, %v1406
        %1408 = vmatprep.mubr.bf16.mxu0 0
        %1409 = vmatmul.mubr.bf16.gmra.mrb[0].mxu0 %v1107
        %v1410 = vpop.f32.mrb[0].mxu0
        %v1411 = vadd.f32 %v1069, %v1410
        %v1412 = vpop.f32.mrb[0].mxu0
        %v1413 = vadd.f32 %v1069, %v1412
        %v1414 = vpop.f32.mrb[0].mxu0
        %v1415 = vadd.f32 %v1074, %v1414
        %v1416 = vpop.f32.mrb[0].mxu0
        %v1417 = vadd.f32 %v1074, %v1416
        %1418 = vmatprep.mubr.bf16.mxu0 0
        %1419 = vmatmul.mubr.bf16.gmra.mrb[0].mxu0 %v1110
        %v1420 = vpop.f32.mrb[0].mxu0
        %v1421 = vadd.f32 %v1079, %v1420
        %v1422 = vpop.f32.mrb[0].mxu0
        %v1423 = vadd.f32 %v1079, %v1422
        %v1424 = vpop.f32.mrb[0].mxu0
        %v1425 = vpop.f32.mrb[0].mxu0
        %1426 = vdwg.mxu0
        %1427 = vmatprep.subr.bf16.mxu0 %v1008
        %1428 = vmatpush1.bf16.msra.mxu0 %v1007
        %1429 = vmatprep.subr.bf16.mxu0 %v1018
        %1430 = vmatpush1.bf16.msra.mxu0 %v1017
        %1431 = vmatprep.subr.bf16.mxu0 %v1028
        %1432 = vmatpush1.bf16.msra.mxu0 %v1027
        %1433 = vmatprep.subr.bf16.mxu0 %v1141
        %1434 = vmatpush1.bf16.msra.mxu0 %v1138
        %1435 = vmatprep.subr.bf16.mxu0 0
        %1436 = vmatpush1.bf16.msra.mxu0 0
        %1437 = vmatprep.subr.bf16.mxu0 0
        %1438 = vmatpush1.bf16.msra.mxu0 0
        %1439 = vmatprep.subr.bf16.mxu0 0
        %1440 = vmatpush1.bf16.msra.mxu0 0
        %1441 = vmatprep.subr.bf16.mxu0 0
        %1442 = vmatpush1.bf16.msra.mxu0 0
        %1443 = vmatprep.subr.bf16.mxu0 0
        %1444 = vmatpush1.bf16.msra.mxu0 0
        %1445 = vmatprep.subr.bf16.mxu0 0
        %1446 = vmatpush1.bf16.msra.mxu0 0
        %1447 = vmatprep.subr.bf16.mxu0 0
        %1448 = vmatpush1.bf16.msra.mxu0 0
        %1449 = vmatprep.subr.bf16.mxu0 0
        %1450 = vmatpush1.bf16.msra.mxu0 0
        %1451 = vmatprep.subr.bf16.mxu0 0
        %1452 = vmatpush1.bf16.msra.mxu0 0
        %1453 = vmatprep.subr.bf16.mxu0 0
        %1454 = vmatpush1.bf16.msra.mxu0 0
        %1455 = vmatprep.subr.bf16.mxu0 0
        %1456 = vmatpush1.bf16.msra.mxu0 0
        %1457 = vmatprep.subr.bf16.mxu0 0
        %1458 = vmatpush1.bf16.msra.mxu0 0
        %1459 = vmatprep.mubr.bf16.mxu0 0
        %1460 = vmatmul.mubr.bf16.gmra.mrb[0].mxu0 %v1101
        %v1461 = vpop.f32.mrb[0].mxu0
        %v1462 = vadd.f32 %v1049, %v1461
        %v1463 = vpop.f32.mrb[0].mxu0
        %v1464 = vadd.f32 %v1049, %v1463
        %v1465 = vpop.f32.mrb[0].mxu0
        %v1466 = vadd.f32 %v1054, %v1465
        %v1467 = vpop.f32.mrb[0].mxu0
        %v1468 = vadd.f32 %v1054, %v1467
        %1469 = vmatprep.mubr.bf16.mxu0 0
        %1470 = vmatmul.mubr.bf16.gmra.mrb[0].mxu0 %v1104
        %v1471 = vpop.f32.mrb[0].mxu0
        %v1472 = vadd.f32 %v1059, %v1471
        %v1473 = vpop.f32.mrb[0].mxu0
        %v1474 = vadd.f32 %v1059, %v1473
        %v1475 = vpop.f32.mrb[0].mxu0
        %v1476 = vadd.f32 %v1064, %v1475
        %v1477 = vpop.f32.mrb[0].mxu0
        %v1478 = vadd.f32 %v1064, %v1477
        %1479 = vmatprep.mubr.bf16.mxu0 0
        %1480 = vmatmul.mubr.bf16.gmra.mrb[0].mxu0 %v1107
        %v1481 = vpop.f32.mrb[0].mxu0
        %v1482 = vadd.f32 %v1069, %v1481
        %v1483 = vpop.f32.mrb[0].mxu0
        %v1484 = vadd.f32 %v1069, %v1483
        %v1485 = vpop.f32.mrb[0].mxu0
        %v1486 = vadd.f32 %v1074, %v1485
        %v1487 = vpop.f32.mrb[0].mxu0
        %v1488 = vadd.f32 %v1074, %v1487
        %1489 = vmatprep.mubr.bf16.mxu0 0
        %1490 = vmatmul.mubr.bf16.gmra.mrb[0].mxu0 %v1110
        %v1491 = vpop.f32.mrb[0].mxu0
        %v1492 = vadd.f32 %v1079, %v1491
        %v1493 = vpop.f32.mrb[0].mxu0
        %v1494 = vadd.f32 %v1079, %v1493
        %v1495 = vpop.f32.mrb[0].mxu0
        %v1496 = vpop.f32.mrb[0].mxu0
        %1497 = vdwg.mxu0
        %v1498 = vtanh.pop %v1178
        %v1499 = vtanh.pop %v1180
        %v1500 = vtanh.pop %v1249
        %v1501 = vtanh.pop %v1251
        %v1502 = vtanh.pop %v1320
        %v1503 = vtanh.pop %v1322
        %v1504 = vtanh.pop %v1391
        %v1505 = vtanh.pop %v1393
        %v1506 = vtanh.pop %v1462
        %v1507 = vtanh.pop %v1464
        %v1508 = vtanh.pop %v1182
        %v1509 = vtanh.pop %v1184
        %v1510 = vtanh.pop %v1253
        %v1511 = vtanh.pop %v1255
        %v1512 = vtanh.pop %v1324
        %v1513 = vtanh.pop %v1326
        %v1514 = vtanh.pop %v1395
        %v1515 = vtanh.pop %v1397
        %v1516 = vtanh.pop %v1466
        %v1517 = vtanh.pop %v1468
        %v1518 = vtanh.pop %v1188
        %v1519 = vtanh.pop %v1190
        %v1520 = vtanh.pop %v1259
        %v1521 = vtanh.pop %v1261
        %v1522 = vtanh.pop %v1330
        %v1523 = vtanh.pop %v1332
        %v1524 = vtanh.pop %v1401
        %v1525 = vtanh.pop %v1403
        %v1526 = vtanh.pop %v1472
        %v1527 = vtanh.pop %v1474
        %v1528 = vtanh.pop %v1192
        %v1529 = vtanh.pop %v1194
        %v1530 = vtanh.pop %v1263
        %v1531 = vtanh.pop %v1265
        %v1532 = vtanh.pop %v1334
        %v1533 = vtanh.pop %v1336
        %v1534 = vtanh.pop %v1405
        %v1535 = vtanh.pop %v1407
        %v1536 = vtanh.pop %v1476
        %v1537 = vtanh.pop %v1478
        %v1538 = vtanh.pop %v1198
        %v1539 = vtanh.pop %v1200
        %v1540 = vtanh.pop %v1269
        %v1541 = vtanh.pop %v1271
        %v1542 = vtanh.pop %v1340
        %v1543 = vtanh.pop %v1342
        %v1544 = vtanh.pop %v1411
        %v1545 = vtanh.pop %v1413
        %v1546 = vtanh.pop %v1482
        %v1547 = vtanh.pop %v1484
        %v1548 = vtanh.pop %v1202
        %v1549 = vtanh.pop %v1204
        %v1550 = vtanh.pop %v1273
        %v1551 = vtanh.pop %v1275
        %v1552 = vtanh.pop %v1344
        %v1553 = vtanh.pop %v1346
        %v1554 = vtanh.pop %v1415
        %v1555 = vtanh.pop %v1417
        %v1556 = vtanh.pop %v1486
        %v1557 = vtanh.pop %v1488
        %v1558 = vtanh.pop %v1208
        %v1559 = vtanh.pop %v1210
        %v1560 = vtanh.pop %v1279
        %v1561 = vtanh.pop %v1281
        %v1562 = vtanh.pop %v1350
        %v1563 = vtanh.pop %v1352
        %v1564 = vtanh.pop %v1421
        %v1565 = vtanh.pop %v1423
        %v1566 = vtanh.pop %v1492
        %v1567 = vtanh.pop %v1494
        %v1568 = vpack.c.bf16 %v1508, %v1498
        %v1569 = vpack.c.bf16 %v1509, %v1499
        %v1570 = vpack.c.bf16 %v1510, %v1500
        %v1571 = vpack.c.bf16 %v1511, %v1501
        %v1572 = vpack.c.bf16 %v1512, %v1502
        %v1573 = vpack.c.bf16 %v1513, %v1503
        %v1574 = vpack.c.bf16 %v1514, %v1504
        %v1575 = vpack.c.bf16 %v1515, %v1505
        %v1576 = vpack.c.bf16 %v1516, %v1506
        %v1577 = vpack.c.bf16 %v1517, %v1507
        %v1578 = vpack.c.bf16 %v1528, %v1518
        %v1579 = vpack.c.bf16 %v1529, %v1519
        %v1580 = vpack.c.bf16 %v1530, %v1520
        %v1581 = vpack.c.bf16 %v1531, %v1521
        %v1582 = vpack.c.bf16 %v1532, %v1522
        %v1583 = vpack.c.bf16 %v1533, %v1523
        %v1584 = vpack.c.bf16 %v1534, %v1524
        %v1585 = vpack.c.bf16 %v1535, %v1525
        %v1586 = vpack.c.bf16 %v1536, %v1526
        %v1587 = vpack.c.bf16 %v1537, %v1527
        %v1588 = vpack.c.bf16 %v1548, %v1538
        %v1589 = vpack.c.bf16 %v1549, %v1539
        %v1590 = vpack.c.bf16 %v1550, %v1540
        %v1591 = vpack.c.bf16 %v1551, %v1541
        %v1592 = vpack.c.bf16 %v1552, %v1542
        %v1593 = vpack.c.bf16 %v1553, %v1543
        %v1594 = vpack.c.bf16 %v1554, %v1544
        %v1595 = vpack.c.bf16 %v1555, %v1545
        %v1596 = vpack.c.bf16 %v1556, %v1546
        %v1597 = vpack.c.bf16 %v1557, %v1547
        %v1598 = vpack.c.bf16 %v1558, %v1558
        %v1599 = vpack.c.bf16 %v1559, %v1559
        %v1600 = vpack.c.bf16 %v1560, %v1560
        %v1601 = vpack.c.bf16 %v1561, %v1561
        %v1602 = vpack.c.bf16 %v1562, %v1562
        %v1603 = vpack.c.bf16 %v1563, %v1563
        %v1604 = vpack.c.bf16 %v1564, %v1564
        %v1605 = vpack.c.bf16 %v1565, %v1565
        %v1606 = vpack.c.bf16 %v1566, %v1566
        %v1607 = vpack.c.bf16 %v1567, %v1567
        %v1608 = vld [vmem:[%s6] sm:$0xff]
        %v1609 = vld [vmem:[%s6 + $0x8] sm:$0xff]
        %v1610 = vld [vmem:[%s6 + $0x10] sm:$0xff]
        %v1611 = vld [vmem:[%s6 + $0x18] sm:$0xff]
        %v1612 = vld [vmem:[%s6 + $0x20] sm:$0xff]
        %v1613 = vld [vmem:[%s6 + $0x28] sm:$0xff]
        %v1614 = vld [vmem:[%s6 + $0x30] sm:$0x3]
        %1616 = vset.pattern.permute.xlu0 0
        %1617 = vperm.xlu0 %1616, %v1608
        %v1618 = vpop.permute.xlu0 %1617
        %1621 = vset.pattern.permute.xlu0 0
        %1622 = vperm.xlu0 %1621, %v1609
        %v1623 = vpop.permute.xlu0 %1622
        %1626 = vset.pattern.permute.xlu0 0
        %1627 = vperm.xlu0 %1626, %v1610
        %v1628 = vpop.permute.xlu0 %1627
        %1631 = vset.pattern.permute.xlu0 0
        %1632 = vperm.xlu0 %1631, %v1611
        %v1633 = vpop.permute.xlu0 %1632
        %1636 = vset.pattern.permute.xlu0 0
        %1637 = vperm.xlu0 %1636, %v1612
        %v1638 = vpop.permute.xlu0 %1637
        %1641 = vset.pattern.permute.xlu0 0
        %1642 = vperm.xlu0 %1641, %v1613
        %v1643 = vpop.permute.xlu0 %1642
        %1646 = vset.pattern.permute.xlu0 0
        %1647 = vperm.xlu0 %1646, %v1614
        %v1648 = vpop.permute.xlu0 %1647
        %v1657 = vunpack.c.l.b16 %v354
        %v1658 = vunpack.c.l.b16 %v355
        %v1659 = vunpack.c.l.b16 %v356
        %v1660 = vunpack.c.l.b16 %v357
        %v1661 = vunpack.c.l.b16 %v358
        %v1662 = vunpack.c.l.b16 %v359
        %v1663 = vunpack.c.l.b16 %v360
        %v1664 = vpack.c.b16 %v1658, %v1657
        %v1665 = vpack.c.b16 %v1660, %v1659
        %v1666 = vpack.c.b16 %v1662, %v1661
        %v1667 = vpack.c.b16 %v1663, %v1663
        %v1669 = vsel %vm1099, %v1664, 0
        %v1672 = vsel %vm1099, %v1665, 0
        %v1675 = vsel %vm1099, %v1666, 0
        %v1678 = vsel %vm1099, %v1667, 0
        %v1681 = vsel %vm1112, %v1598, 0
        %v1684 = vsel %vm1112, %v1599, 0
        %v1687 = vsel %vm1112, %v1600, 0
        %v1690 = vsel %vm1112, %v1601, 0
        %v1693 = vsel %vm1112, %v1602, 0
        %v1696 = vsel %vm1112, %v1603, 0
        %v1699 = vsel %vm1112, %v1604, 0
        %v1702 = vsel %vm1112, %v1605, 0
        %v1705 = vsel %vm1112, %v1606, 0
        %v1708 = vsel %vm1112, %v1607, 0
        %1710 = vmatprep.subr.bf16.mxu0 %v1569
        %1711 = vmatpush1.bf16.msra.mxu0 %v1568
        %1712 = vmatprep.subr.bf16.mxu0 %v1579
        %1713 = vmatpush1.bf16.msra.mxu0 %v1578
        %1714 = vmatprep.subr.bf16.mxu0 %v1589
        %1715 = vmatpush1.bf16.msra.mxu0 %v1588
        %1716 = vmatprep.subr.bf16.mxu0 %v1684
        %1717 = vmatpush1.bf16.msra.mxu0 %v1681
        %1718 = vmatprep.subr.bf16.mxu0 0
        %1719 = vmatpush1.bf16.msra.mxu0 0
        %1720 = vmatprep.subr.bf16.mxu0 0
        %1721 = vmatpush1.bf16.msra.mxu0 0
        %1722 = vmatprep.subr.bf16.mxu0 0
        %1723 = vmatpush1.bf16.msra.mxu0 0
        %1724 = vmatprep.subr.bf16.mxu0 0
        %1725 = vmatpush1.bf16.msra.mxu0 0
        %1726 = vmatprep.subr.bf16.mxu0 0
        %1727 = vmatpush1.bf16.msra.mxu0 0
        %1728 = vmatprep.subr.bf16.mxu0 0
        %1729 = vmatpush1.bf16.msra.mxu0 0
        %1730 = vmatprep.subr.bf16.mxu0 0
        %1731 = vmatpush1.bf16.msra.mxu0 0
        %1732 = vmatprep.subr.bf16.mxu0 0
        %1733 = vmatpush1.bf16.msra.mxu0 0
        %1734 = vmatprep.subr.bf16.mxu0 0
        %1735 = vmatpush1.bf16.msra.mxu0 0
        %1736 = vmatprep.subr.bf16.mxu0 0
        %1737 = vmatpush1.bf16.msra.mxu0 0
        %1738 = vmatprep.subr.bf16.mxu0 0
        %1739 = vmatpush1.bf16.msra.mxu0 0
        %1740 = vmatprep.subr.bf16.mxu0 0
        %1741 = vmatpush1.bf16.msra.mxu0 0
        %1742 = vmatprep.mubr.bf16.mxu0 0
        %1743 = vmatmul.mubr.bf16.gmra.mrb[0].mxu0 %v1669
        %v1744 = vpop.f32.mrb[0].mxu0
        %v1745 = vadd.f32 %v1618, %v1744
        %v1746 = vpop.f32.mrb[0].mxu0
        %v1747 = vadd.f32 %v1618, %v1746
        %v1748 = vpop.f32.mrb[0].mxu0
        %v1749 = vadd.f32 %v1623, %v1748
        %v1750 = vpop.f32.mrb[0].mxu0
        %v1751 = vadd.f32 %v1623, %v1750
        %1752 = vmatprep.mubr.bf16.mxu0 0
        %1753 = vmatmul.mubr.bf16.gmra.mrb[0].mxu0 %v1672
        %v1754 = vpop.f32.mrb[0].mxu0
        %v1755 = vadd.f32 %v1628, %v1754
        %v1756 = vpop.f32.mrb[0].mxu0
        %v1757 = vadd.f32 %v1628, %v1756
        %v1758 = vpop.f32.mrb[0].mxu0
        %v1759 = vadd.f32 %v1633, %v1758
        %v1760 = vpop.f32.mrb[0].mxu0
        %v1761 = vadd.f32 %v1633, %v1760
        %1762 = vmatprep.mubr.bf16.mxu0 0
        %1763 = vmatmul.mubr.bf16.gmra.mrb[0].mxu0 %v1675
        %v1764 = vpop.f32.mrb[0].mxu0
        %v1765 = vadd.f32 %v1638, %v1764
        %v1766 = vpop.f32.mrb[0].mxu0
        %v1767 = vadd.f32 %v1638, %v1766
        %v1768 = vpop.f32.mrb[0].mxu0
        %v1769 = vadd.f32 %v1643, %v1768
        %v1770 = vpop.f32.mrb[0].mxu0
        %v1771 = vadd.f32 %v1643, %v1770
        %1772 = vmatprep.mubr.bf16.mxu0 0
        %1773 = vmatmul.mubr.bf16.gmra.mrb[0].mxu0 %v1678
        %v1774 = vpop.f32.mrb[0].mxu0
        %v1775 = vadd.f32 %v1648, %v1774
        %v1776 = vpop.f32.mrb[0].mxu0
        %v1777 = vadd.f32 %v1648, %v1776
        %v1778 = vpop.f32.mrb[0].mxu0
        %v1779 = vpop.f32.mrb[0].mxu0
        %1780 = vdwg.mxu0
        %1781 = vmatprep.subr.bf16.mxu0 %v1571
        %1782 = vmatpush1.bf16.msra.mxu0 %v1570
        %1783 = vmatprep.subr.bf16.mxu0 %v1581
        %1784 = vmatpush1.bf16.msra.mxu0 %v1580
        %1785 = vmatprep.subr.bf16.mxu0 %v1591
        %1786 = vmatpush1.bf16.msra.mxu0 %v1590
        %1787 = vmatprep.subr.bf16.mxu0 %v1690
        %1788 = vmatpush1.bf16.msra.mxu0 %v1687
        %1789 = vmatprep.subr.bf16.mxu0 0
        %1790 = vmatpush1.bf16.msra.mxu0 0
        %1791 = vmatprep.subr.bf16.mxu0 0
        %1792 = vmatpush1.bf16.msra.mxu0 0
        %1793 = vmatprep.subr.bf16.mxu0 0
        %1794 = vmatpush1.bf16.msra.mxu0 0
        %1795 = vmatprep.subr.bf16.mxu0 0
        %1796 = vmatpush1.bf16.msra.mxu0 0
        %1797 = vmatprep.subr.bf16.mxu0 0
        %1798 = vmatpush1.bf16.msra.mxu0 0
        %1799 = vmatprep.subr.bf16.mxu0 0
        %1800 = vmatpush1.bf16.msra.mxu0 0
        %1801 = vmatprep.subr.bf16.mxu0 0
        %1802 = vmatpush1.bf16.msra.mxu0 0
        %1803 = vmatprep.subr.bf16.mxu0 0
        %1804 = vmatpush1.bf16.msra.mxu0 0
        %1805 = vmatprep.subr.bf16.mxu0 0
        %1806 = vmatpush1.bf16.msra.mxu0 0
        %1807 = vmatprep.subr.bf16.mxu0 0
        %1808 = vmatpush1.bf16.msra.mxu0 0
        %1809 = vmatprep.subr.bf16.mxu0 0
        %1810 = vmatpush1.bf16.msra.mxu0 0
        %1811 = vmatprep.subr.bf16.mxu0 0
        %1812 = vmatpush1.bf16.msra.mxu0 0
        %1813 = vmatprep.mubr.bf16.mxu0 0
        %1814 = vmatmul.mubr.bf16.gmra.mrb[0].mxu0 %v1669
        %v1815 = vpop.f32.mrb[0].mxu0
        %v1816 = vadd.f32 %v1618, %v1815
        %v1817 = vpop.f32.mrb[0].mxu0
        %v1818 = vadd.f32 %v1618, %v1817
        %v1819 = vpop.f32.mrb[0].mxu0
        %v1820 = vadd.f32 %v1623, %v1819
        %v1821 = vpop.f32.mrb[0].mxu0
        %v1822 = vadd.f32 %v1623, %v1821
        %1823 = vmatprep.mubr.bf16.mxu0 0
        %1824 = vmatmul.mubr.bf16.gmra.mrb[0].mxu0 %v1672
        %v1825 = vpop.f32.mrb[0].mxu0
        %v1826 = vadd.f32 %v1628, %v1825
        %v1827 = vpop.f32.mrb[0].mxu0
        %v1828 = vadd.f32 %v1628, %v1827
        %v1829 = vpop.f32.mrb[0].mxu0
        %v1830 = vadd.f32 %v1633, %v1829
        %v1831 = vpop.f32.mrb[0].mxu0
        %v1832 = vadd.f32 %v1633, %v1831
        %1833 = vmatprep.mubr.bf16.mxu0 0
        %1834 = vmatmul.mubr.bf16.gmra.mrb[0].mxu0 %v1675
        %v1835 = vpop.f32.mrb[0].mxu0
        %v1836 = vadd.f32 %v1638, %v1835
        %v1837 = vpop.f32.mrb[0].mxu0
        %v1838 = vadd.f32 %v1638, %v1837
        %v1839 = vpop.f32.mrb[0].mxu0
        %v1840 = vadd.f32 %v1643, %v1839
        %v1841 = vpop.f32.mrb[0].mxu0
        %v1842 = vadd.f32 %v1643, %v1841
        %1843 = vmatprep.mubr.bf16.mxu0 0
        %1844 = vmatmul.mubr.bf16.gmra.mrb[0].mxu0 %v1678
        %v1845 = vpop.f32.mrb[0].mxu0
        %v1846 = vadd.f32 %v1648, %v1845
        %v1847 = vpop.f32.mrb[0].mxu0
        %v1848 = vadd.f32 %v1648, %v1847
        %v1849 = vpop.f32.mrb[0].mxu0
        %v1850 = vpop.f32.mrb[0].mxu0
        %1851 = vdwg.mxu0
        %1852 = vmatprep.subr.bf16.mxu0 %v1573
        %1853 = vmatpush1.bf16.msra.mxu0 %v1572
        %1854 = vmatprep.subr.bf16.mxu0 %v1583
        %1855 = vmatpush1.bf16.msra.mxu0 %v1582
        %1856 = vmatprep.subr.bf16.mxu0 %v1593
        %1857 = vmatpush1.bf16.msra.mxu0 %v1592
        %1858 = vmatprep.subr.bf16.mxu0 %v1696
        %1859 = vmatpush1.bf16.msra.mxu0 %v1693
        %1860 = vmatprep.subr.bf16.mxu0 0
        %1861 = vmatpush1.bf16.msra.mxu0 0
        %1862 = vmatprep.subr.bf16.mxu0 0
        %1863 = vmatpush1.bf16.msra.mxu0 0
        %1864 = vmatprep.subr.bf16.mxu0 0
        %1865 = vmatpush1.bf16.msra.mxu0 0
        %1866 = vmatprep.subr.bf16.mxu0 0
        %1867 = vmatpush1.bf16.msra.mxu0 0
        %1868 = vmatprep.subr.bf16.mxu0 0
        %1869 = vmatpush1.bf16.msra.mxu0 0
        %1870 = vmatprep.subr.bf16.mxu0 0
        %1871 = vmatpush1.bf16.msra.mxu0 0
        %1872 = vmatprep.subr.bf16.mxu0 0
        %1873 = vmatpush1.bf16.msra.mxu0 0
        %1874 = vmatprep.subr.bf16.mxu0 0
        %1875 = vmatpush1.bf16.msra.mxu0 0
        %1876 = vmatprep.subr.bf16.mxu0 0
        %1877 = vmatpush1.bf16.msra.mxu0 0
        %1878 = vmatprep.subr.bf16.mxu0 0
        %1879 = vmatpush1.bf16.msra.mxu0 0
        %1880 = vmatprep.subr.bf16.mxu0 0
        %1881 = vmatpush1.bf16.msra.mxu0 0
        %1882 = vmatprep.subr.bf16.mxu0 0
        %1883 = vmatpush1.bf16.msra.mxu0 0
        %1884 = vmatprep.mubr.bf16.mxu0 0
        %1885 = vmatmul.mubr.bf16.gmra.mrb[0].mxu0 %v1669
        %v1886 = vpop.f32.mrb[0].mxu0
        %v1887 = vadd.f32 %v1618, %v1886
        %v1888 = vpop.f32.mrb[0].mxu0
        %v1889 = vadd.f32 %v1618, %v1888
        %v1890 = vpop.f32.mrb[0].mxu0
        %v1891 = vadd.f32 %v1623, %v1890
        %v1892 = vpop.f32.mrb[0].mxu0
        %v1893 = vadd.f32 %v1623, %v1892
        %1894 = vmatprep.mubr.bf16.mxu0 0
        %1895 = vmatmul.mubr.bf16.gmra.mrb[0].mxu0 %v1672
        %v1896 = vpop.f32.mrb[0].mxu0
        %v1897 = vadd.f32 %v1628, %v1896
        %v1898 = vpop.f32.mrb[0].mxu0
        %v1899 = vadd.f32 %v1628, %v1898
        %v1900 = vpop.f32.mrb[0].mxu0
        %v1901 = vadd.f32 %v1633, %v1900
        %v1902 = vpop.f32.mrb[0].mxu0
        %v1903 = vadd.f32 %v1633, %v1902
        %1904 = vmatprep.mubr.bf16.mxu0 0
        %1905 = vmatmul.mubr.bf16.gmra.mrb[0].mxu0 %v1675
        %v1906 = vpop.f32.mrb[0].mxu0
        %v1907 = vadd.f32 %v1638, %v1906
        %v1908 = vpop.f32.mrb[0].mxu0
        %v1909 = vadd.f32 %v1638, %v1908
        %v1910 = vpop.f32.mrb[0].mxu0
        %v1911 = vadd.f32 %v1643, %v1910
        %v1912 = vpop.f32.mrb[0].mxu0
        %v1913 = vadd.f32 %v1643, %v1912
        %1914 = vmatprep.mubr.bf16.mxu0 0
        %1915 = vmatmul.mubr.bf16.gmra.mrb[0].mxu0 %v1678
        %v1916 = vpop.f32.mrb[0].mxu0
        %v1917 = vadd.f32 %v1648, %v1916
        %v1918 = vpop.f32.mrb[0].mxu0
        %v1919 = vadd.f32 %v1648, %v1918
        %v1920 = vpop.f32.mrb[0].mxu0
        %v1921 = vpop.f32.mrb[0].mxu0
        %1922 = vdwg.mxu0
        %1923 = vmatprep.subr.bf16.mxu0 %v1575
        %1924 = vmatpush1.bf16.msra.mxu0 %v1574
        %1925 = vmatprep.subr.bf16.mxu0 %v1585
        %1926 = vmatpush1.bf16.msra.mxu0 %v1584
        %1927 = vmatprep.subr.bf16.mxu0 %v1595
        %1928 = vmatpush1.bf16.msra.mxu0 %v1594
        %1929 = vmatprep.subr.bf16.mxu0 %v1702
        %1930 = vmatpush1.bf16.msra.mxu0 %v1699
        %1931 = vmatprep.subr.bf16.mxu0 0
        %1932 = vmatpush1.bf16.msra.mxu0 0
        %1933 = vmatprep.subr.bf16.mxu0 0
        %1934 = vmatpush1.bf16.msra.mxu0 0
        %1935 = vmatprep.subr.bf16.mxu0 0
        %1936 = vmatpush1.bf16.msra.mxu0 0
        %1937 = vmatprep.subr.bf16.mxu0 0
        %1938 = vmatpush1.bf16.msra.mxu0 0
        %1939 = vmatprep.subr.bf16.mxu0 0
        %1940 = vmatpush1.bf16.msra.mxu0 0
        %1941 = vmatprep.subr.bf16.mxu0 0
        %1942 = vmatpush1.bf16.msra.mxu0 0
        %1943 = vmatprep.subr.bf16.mxu0 0
        %1944 = vmatpush1.bf16.msra.mxu0 0
        %1945 = vmatprep.subr.bf16.mxu0 0
        %1946 = vmatpush1.bf16.msra.mxu0 0
        %1947 = vmatprep.subr.bf16.mxu0 0
        %1948 = vmatpush1.bf16.msra.mxu0 0
        %1949 = vmatprep.subr.bf16.mxu0 0
        %1950 = vmatpush1.bf16.msra.mxu0 0
        %1951 = vmatprep.subr.bf16.mxu0 0
        %1952 = vmatpush1.bf16.msra.mxu0 0
        %1953 = vmatprep.subr.bf16.mxu0 0
        %1954 = vmatpush1.bf16.msra.mxu0 0
        %1955 = vmatprep.mubr.bf16.mxu0 0
        %1956 = vmatmul.mubr.bf16.gmra.mrb[0].mxu0 %v1669
        %v1957 = vpop.f32.mrb[0].mxu0
        %v1958 = vadd.f32 %v1618, %v1957
        %v1959 = vpop.f32.mrb[0].mxu0
        %v1960 = vadd.f32 %v1618, %v1959
        %v1961 = vpop.f32.mrb[0].mxu0
        %v1962 = vadd.f32 %v1623, %v1961
        %v1963 = vpop.f32.mrb[0].mxu0
        %v1964 = vadd.f32 %v1623, %v1963
        %1965 = vmatprep.mubr.bf16.mxu0 0
        %1966 = vmatmul.mubr.bf16.gmra.mrb[0].mxu0 %v1672
        %v1967 = vpop.f32.mrb[0].mxu0
        %v1968 = vadd.f32 %v1628, %v1967
        %v1969 = vpop.f32.mrb[0].mxu0
        %v1970 = vadd.f32 %v1628, %v1969
        %v1971 = vpop.f32.mrb[0].mxu0
        %v1972 = vadd.f32 %v1633, %v1971
        %v1973 = vpop.f32.mrb[0].mxu0
        %v1974 = vadd.f32 %v1633, %v1973
        %1975 = vmatprep.mubr.bf16.mxu0 0
        %1976 = vmatmul.mubr.bf16.gmra.mrb[0].mxu0 %v1675
        %v1977 = vpop.f32.mrb[0].mxu0
        %v1978 = vadd.f32 %v1638, %v1977
        %v1979 = vpop.f32.mrb[0].mxu0
        %v1980 = vadd.f32 %v1638, %v1979
        %v1981 = vpop.f32.mrb[0].mxu0
        %v1982 = vadd.f32 %v1643, %v1981
        %v1983 = vpop.f32.mrb[0].mxu0
        %v1984 = vadd.f32 %v1643, %v1983
        %1985 = vmatprep.mubr.bf16.mxu0 0
        %1986 = vmatmul.mubr.bf16.gmra.mrb[0].mxu0 %v1678
        %v1987 = vpop.f32.mrb[0].mxu0
        %v1988 = vadd.f32 %v1648, %v1987
        %v1989 = vpop.f32.mrb[0].mxu0
        %v1990 = vadd.f32 %v1648, %v1989
        %v1991 = vpop.f32.mrb[0].mxu0
        %v1992 = vpop.f32.mrb[0].mxu0
        %1993 = vdwg.mxu0
        %1994 = vmatprep.subr.bf16.mxu0 %v1577
        %1995 = vmatpush1.bf16.msra.mxu0 %v1576
        %1996 = vmatprep.subr.bf16.mxu0 %v1587
        %1997 = vmatpush1.bf16.msra.mxu0 %v1586
        %1998 = vmatprep.subr.bf16.mxu0 %v1597
        %1999 = vmatpush1.bf16.msra.mxu0 %v1596
        %2000 = vmatprep.subr.bf16.mxu0 %v1708
        %2001 = vmatpush1.bf16.msra.mxu0 %v1705
        %2002 = vmatprep.subr.bf16.mxu0 0
        %2003 = vmatpush1.bf16.msra.mxu0 0
        %2004 = vmatprep.subr.bf16.mxu0 0
        %2005 = vmatpush1.bf16.msra.mxu0 0
        %2006 = vmatprep.subr.bf16.mxu0 0
        %2007 = vmatpush1.bf16.msra.mxu0 0
        %2008 = vmatprep.subr.bf16.mxu0 0
        %2009 = vmatpush1.bf16.msra.mxu0 0
        %2010 = vmatprep.subr.bf16.mxu0 0
        %2011 = vmatpush1.bf16.msra.mxu0 0
        %2012 = vmatprep.subr.bf16.mxu0 0
        %2013 = vmatpush1.bf16.msra.mxu0 0
        %2014 = vmatprep.subr.bf16.mxu0 0
        %2015 = vmatpush1.bf16.msra.mxu0 0
        %2016 = vmatprep.subr.bf16.mxu0 0
        %2017 = vmatpush1.bf16.msra.mxu0 0
        %2018 = vmatprep.subr.bf16.mxu0 0
        %2019 = vmatpush1.bf16.msra.mxu0 0
        %2020 = vmatprep.subr.bf16.mxu0 0
        %2021 = vmatpush1.bf16.msra.mxu0 0
        %2022 = vmatprep.subr.bf16.mxu0 0
        %2023 = vmatpush1.bf16.msra.mxu0 0
        %2024 = vmatprep.subr.bf16.mxu0 0
        %2025 = vmatpush1.bf16.msra.mxu0 0
        %2026 = vmatprep.mubr.bf16.mxu0 0
        %2027 = vmatmul.mubr.bf16.gmra.mrb[0].mxu0 %v1669
        %v2028 = vpop.f32.mrb[0].mxu0
        %v2029 = vadd.f32 %v1618, %v2028
        %v2030 = vpop.f32.mrb[0].mxu0
        %v2031 = vadd.f32 %v1618, %v2030
        %v2032 = vpop.f32.mrb[0].mxu0
        %v2033 = vadd.f32 %v1623, %v2032
        %v2034 = vpop.f32.mrb[0].mxu0
        %v2035 = vadd.f32 %v1623, %v2034
        %2036 = vmatprep.mubr.bf16.mxu0 0
        %2037 = vmatmul.mubr.bf16.gmra.mrb[0].mxu0 %v1672
        %v2038 = vpop.f32.mrb[0].mxu0
        %v2039 = vadd.f32 %v1628, %v2038
        %v2040 = vpop.f32.mrb[0].mxu0
        %v2041 = vadd.f32 %v1628, %v2040
        %v2042 = vpop.f32.mrb[0].mxu0
        %v2043 = vadd.f32 %v1633, %v2042
        %v2044 = vpop.f32.mrb[0].mxu0
        %v2045 = vadd.f32 %v1633, %v2044
        %2046 = vmatprep.mubr.bf16.mxu0 0
        %2047 = vmatmul.mubr.bf16.gmra.mrb[0].mxu0 %v1675
        %v2048 = vpop.f32.mrb[0].mxu0
        %v2049 = vadd.f32 %v1638, %v2048
        %v2050 = vpop.f32.mrb[0].mxu0
        %v2051 = vadd.f32 %v1638, %v2050
        %v2052 = vpop.f32.mrb[0].mxu0
        %v2053 = vadd.f32 %v1643, %v2052
        %v2054 = vpop.f32.mrb[0].mxu0
        %v2055 = vadd.f32 %v1643, %v2054
        %2056 = vmatprep.mubr.bf16.mxu0 0
        %2057 = vmatmul.mubr.bf16.gmra.mrb[0].mxu0 %v1678
        %v2058 = vpop.f32.mrb[0].mxu0
        %v2059 = vadd.f32 %v1648, %v2058
        %v2060 = vpop.f32.mrb[0].mxu0
        %v2061 = vadd.f32 %v1648, %v2060
        %v2062 = vpop.f32.mrb[0].mxu0
        %v2063 = vpop.f32.mrb[0].mxu0
        %2064 = vdwg.mxu0
        %v2065 = vtanh.pop %v1745
        %v2066 = vtanh.pop %v1747
        %v2067 = vtanh.pop %v1816
        %v2068 = vtanh.pop %v1818
        %v2069 = vtanh.pop %v1887
        %v2070 = vtanh.pop %v1889
        %v2071 = vtanh.pop %v1958
        %v2072 = vtanh.pop %v1960
        %v2073 = vtanh.pop %v2029
        %v2074 = vtanh.pop %v2031
        %v2075 = vtanh.pop %v1749
        %v2076 = vtanh.pop %v1751
        %v2077 = vtanh.pop %v1820
        %v2078 = vtanh.pop %v1822
        %v2079 = vtanh.pop %v1891
        %v2080 = vtanh.pop %v1893
        %v2081 = vtanh.pop %v1962
        %v2082 = vtanh.pop %v1964
        %v2083 = vtanh.pop %v2033
        %v2084 = vtanh.pop %v2035
        %v2085 = vtanh.pop %v1755
        %v2086 = vtanh.pop %v1757
        %v2087 = vtanh.pop %v1826
        %v2088 = vtanh.pop %v1828
        %v2089 = vtanh.pop %v1897
        %v2090 = vtanh.pop %v1899
        %v2091 = vtanh.pop %v1968
        %v2092 = vtanh.pop %v1970
        %v2093 = vtanh.pop %v2039
        %v2094 = vtanh.pop %v2041
        %v2095 = vtanh.pop %v1759
        %v2096 = vtanh.pop %v1761
        %v2097 = vtanh.pop %v1830
        %v2098 = vtanh.pop %v1832
        %v2099 = vtanh.pop %v1901
        %v2100 = vtanh.pop %v1903
        %v2101 = vtanh.pop %v1972
        %v2102 = vtanh.pop %v1974
        %v2103 = vtanh.pop %v2043
        %v2104 = vtanh.pop %v2045
        %v2105 = vtanh.pop %v1765
        %v2106 = vtanh.pop %v1767
        %v2107 = vtanh.pop %v1836
        %v2108 = vtanh.pop %v1838
        %v2109 = vtanh.pop %v1907
        %v2110 = vtanh.pop %v1909
        %v2111 = vtanh.pop %v1978
        %v2112 = vtanh.pop %v1980
        %v2113 = vtanh.pop %v2049
        %v2114 = vtanh.pop %v2051
        %v2115 = vtanh.pop %v1769
        %v2116 = vtanh.pop %v1771
        %v2117 = vtanh.pop %v1840
        %v2118 = vtanh.pop %v1842
        %v2119 = vtanh.pop %v1911
        %v2120 = vtanh.pop %v1913
        %v2121 = vtanh.pop %v1982
        %v2122 = vtanh.pop %v1984
        %v2123 = vtanh.pop %v2053
        %v2124 = vtanh.pop %v2055
        %v2125 = vtanh.pop %v1775
        %v2126 = vtanh.pop %v1777
        %v2127 = vtanh.pop %v1846
        %v2128 = vtanh.pop %v1848
        %v2129 = vtanh.pop %v1917
        %v2130 = vtanh.pop %v1919
        %v2131 = vtanh.pop %v1988
        %v2132 = vtanh.pop %v1990
        %v2133 = vtanh.pop %v2059
        %v2134 = vtanh.pop %v2061
        %v2135 = vld [vmem:[%s7] sm:$0x1]
        %2136 = vxpose.xlu0.b32.start [1/16] %v2135, 128
        %2137 = vxpose.xlu0.b32.cont [2/16] 0.0, 128
        %2138 = vxpose.xlu0.b32.cont [3/16] 0.0, 128
        %2139 = vxpose.xlu0.b32.cont [4/16] 0.0, 128
        %2140 = vxpose.xlu0.b32.cont [5/16] 0.0, 128
        %2141 = vxpose.xlu0.b32.cont [6/16] 0.0, 128
        %2142 = vxpose.xlu0.b32.cont [7/16] 0.0, 128
        %2143 = vxpose.xlu0.b32.cont [8/16] 0.0, 128
        %2144 = vxpose.xlu0.b32.cont [9/16] 0.0, 128
        %2145 = vxpose.xlu0.b32.cont [10/16] 0.0, 128
        %2146 = vxpose.xlu0.b32.cont [11/16] 0.0, 128
        %2147 = vxpose.xlu0.b32.cont [12/16] 0.0, 128
        %2148 = vxpose.xlu0.b32.cont [13/16] 0.0, 128
        %2149 = vxpose.xlu0.b32.cont [14/16] 0.0, 128
        %2150 = vxpose.xlu0.b32.cont [15/16] 0.0, 128
        %2151 = vxpose.xlu0.b32.end [16/16] 0.0, 128
        %v2152 = vpop.trf.xlu0
        %v2153 = vpop.trf.xlu0
        %v2154 = vpop.trf.xlu0
        %v2155 = vpop.trf.xlu0
        %v2156 = vpop.trf.xlu0
        %v2157 = vpop.trf.xlu0
        %v2158 = vpop.trf.xlu0
        %v2159 = vpop.trf.xlu0
        %v2160 = vpop.trf.xlu0
        %v2161 = vpop.trf.xlu0
        %v2162 = vpop.trf.xlu0
        %v2163 = vpop.trf.xlu0
        %v2164 = vpop.trf.xlu0
        %v2165 = vpop.trf.xlu0
        %v2166 = vpop.trf.xlu0
        %v2167 = vpop.trf.xlu0
        %2169 = vset.pattern.permute.xlu0 0
        %2170 = vperm.xlu0 %2169, %v2152
        %v2171 = vpop.permute.xlu0 %2170
        %2174 = vset.pattern.permute.xlu0 0
        %2175 = vperm.xlu0 %2174, %v2153
        %v2176 = vpop.permute.xlu0 %2175
        %2179 = vset.pattern.permute.xlu0 0
        %2180 = vperm.xlu0 %2179, %v2154
        %v2181 = vpop.permute.xlu0 %2180
        %2184 = vset.pattern.permute.xlu0 0
        %2185 = vperm.xlu0 %2184, %v2155
        %v2186 = vpop.permute.xlu0 %2185
        %2189 = vset.pattern.permute.xlu0 0
        %2190 = vperm.xlu0 %2189, %v2156
        %v2191 = vpop.permute.xlu0 %2190
        %2194 = vset.pattern.permute.xlu0 0
        %2195 = vperm.xlu0 %2194, %v2157
        %v2196 = vpop.permute.xlu0 %2195
        %2199 = vset.pattern.permute.xlu0 0
        %2200 = vperm.xlu0 %2199, %v2158
        %v2201 = vpop.permute.xlu0 %2200
        %v2203 = vmul.f32 %v2171, %v2065
        %v2204 = vmul.f32 %v2171, %v2066
        %v2205 = vmul.f32 %v2171, %v2067
        %v2206 = vmul.f32 %v2171, %v2068
        %v2207 = vmul.f32 %v2171, %v2069
        %v2208 = vmul.f32 %v2171, %v2070
        %v2209 = vmul.f32 %v2171, %v2071
        %v2210 = vmul.f32 %v2171, %v2072
        %v2211 = vmul.f32 %v2171, %v2073
        %v2212 = vmul.f32 %v2171, %v2074
        %v2213 = vmul.f32 %v2176, %v2075
        %v2214 = vmul.f32 %v2176, %v2076
        %v2215 = vmul.f32 %v2176, %v2077
        %v2216 = vmul.f32 %v2176, %v2078
        %v2217 = vmul.f32 %v2176, %v2079
        %v2218 = vmul.f32 %v2176, %v2080
        %v2219 = vmul.f32 %v2176, %v2081
        %v2220 = vmul.f32 %v2176, %v2082
        %v2221 = vmul.f32 %v2176, %v2083
        %v2222 = vmul.f32 %v2176, %v2084
        %v2223 = vmul.f32 %v2181, %v2085
        %v2224 = vmul.f32 %v2181, %v2086
        %v2225 = vmul.f32 %v2181, %v2087
        %v2226 = vmul.f32 %v2181, %v2088
        %v2227 = vmul.f32 %v2181, %v2089
        %v2228 = vmul.f32 %v2181, %v2090
        %v2229 = vmul.f32 %v2181, %v2091
        %v2230 = vmul.f32 %v2181, %v2092
        %v2231 = vmul.f32 %v2181, %v2093
        %v2232 = vmul.f32 %v2181, %v2094
        %v2233 = vmul.f32 %v2186, %v2095
        %v2234 = vmul.f32 %v2186, %v2096
        %v2235 = vmul.f32 %v2186, %v2097
        %v2236 = vmul.f32 %v2186, %v2098
        %v2237 = vmul.f32 %v2186, %v2099
        %v2238 = vmul.f32 %v2186, %v2100
        %v2239 = vmul.f32 %v2186, %v2101
        %v2240 = vmul.f32 %v2186, %v2102
        %v2241 = vmul.f32 %v2186, %v2103
        %v2242 = vmul.f32 %v2186, %v2104
        %v2243 = vmul.f32 %v2191, %v2105
        %v2244 = vmul.f32 %v2191, %v2106
        %v2245 = vmul.f32 %v2191, %v2107
        %v2246 = vmul.f32 %v2191, %v2108
        %v2247 = vmul.f32 %v2191, %v2109
        %v2248 = vmul.f32 %v2191, %v2110
        %v2249 = vmul.f32 %v2191, %v2111
        %v2250 = vmul.f32 %v2191, %v2112
        %v2251 = vmul.f32 %v2191, %v2113
        %v2252 = vmul.f32 %v2191, %v2114
        %v2253 = vmul.f32 %v2196, %v2115
        %v2254 = vmul.f32 %v2196, %v2116
        %v2255 = vmul.f32 %v2196, %v2117
        %v2256 = vmul.f32 %v2196, %v2118
        %v2257 = vmul.f32 %v2196, %v2119
        %v2258 = vmul.f32 %v2196, %v2120
        %v2259 = vmul.f32 %v2196, %v2121
        %v2260 = vmul.f32 %v2196, %v2122
        %v2261 = vmul.f32 %v2196, %v2123
        %v2262 = vmul.f32 %v2196, %v2124
        %v2263 = vmul.f32 %v2201, %v2125
        %v2264 = vmul.f32 %v2201, %v2126
        %v2265 = vmul.f32 %v2201, %v2127
        %v2266 = vmul.f32 %v2201, %v2128
        %v2267 = vmul.f32 %v2201, %v2129
        %v2268 = vmul.f32 %v2201, %v2130
        %v2269 = vmul.f32 %v2201, %v2131
        %v2270 = vmul.f32 %v2201, %v2132
        %v2271 = vmul.f32 %v2201, %v2133
        %v2272 = vmul.f32 %v2201, %v2134
        %v2273 = vadd.f32 %v2203, %v2213
        %v2274 = vadd.f32 %v2273, %v2223
        %v2275 = vadd.f32 %v2274, %v2233
        %v2276 = vadd.f32 %v2275, %v2243
        %v2277 = vadd.f32 %v2276, %v2253
        %vm2278 = vcmask 1041408
        %v2279 = vsel %vm2278, %v2263, 0.0
        %v2280 = vadd.f32 %v2277, %v2279
        %v2281 = vrot.slane %v2280, 4
        %v2282 = vadd.f32 %v2280, %v2281
        %v2283 = vrot.slane %v2282, 2
        %v2284 = vadd.f32 %v2282, %v2283
        %v2285 = vrot.slane %v2284, 1
        %v2286 = vadd.f32 %v2284, %v2285
        %v2287 = vadd.f32 %v2204, %v2214
        %v2288 = vadd.f32 %v2287, %v2224
        %v2289 = vadd.f32 %v2288, %v2234
        %v2290 = vadd.f32 %v2289, %v2244
        %v2291 = vadd.f32 %v2290, %v2254
        %v2292 = vsel %vm2278, %v2264, 0.0
        %v2293 = vadd.f32 %v2291, %v2292
        %v2294 = vrot.slane %v2293, 4
        %v2295 = vadd.f32 %v2293, %v2294
        %v2296 = vrot.slane %v2295, 2
        %v2297 = vadd.f32 %v2295, %v2296
        %v2298 = vrot.slane %v2297, 1
        %v2299 = vadd.f32 %v2297, %v2298
        %v2300 = vadd.f32 %v2205, %v2215
        %v2301 = vadd.f32 %v2300, %v2225
        %v2302 = vadd.f32 %v2301, %v2235
        %v2303 = vadd.f32 %v2302, %v2245
        %v2304 = vadd.f32 %v2303, %v2255
        %v2305 = vsel %vm2278, %v2265, 0.0
        %v2306 = vadd.f32 %v2304, %v2305
        %v2307 = vrot.slane %v2306, 4
        %v2308 = vadd.f32 %v2306, %v2307
        %v2309 = vrot.slane %v2308, 2
        %v2310 = vadd.f32 %v2308, %v2309
        %v2311 = vrot.slane %v2310, 1
        %v2312 = vadd.f32 %v2310, %v2311
        %v2313 = vadd.f32 %v2206, %v2216
        %v2314 = vadd.f32 %v2313, %v2226
        %v2315 = vadd.f32 %v2314, %v2236
        %v2316 = vadd.f32 %v2315, %v2246
        %v2317 = vadd.f32 %v2316, %v2256
        %v2318 = vsel %vm2278, %v2266, 0.0
        %v2319 = vadd.f32 %v2317, %v2318
        %v2320 = vrot.slane %v2319, 4
        %v2321 = vadd.f32 %v2319, %v2320
        %v2322 = vrot.slane %v2321, 2
        %v2323 = vadd.f32 %v2321, %v2322
        %v2324 = vrot.slane %v2323, 1
        %v2325 = vadd.f32 %v2323, %v2324
        %v2326 = vadd.f32 %v2207, %v2217
        %v2327 = vadd.f32 %v2326, %v2227
        %v2328 = vadd.f32 %v2327, %v2237
        %v2329 = vadd.f32 %v2328, %v2247
        %v2330 = vadd.f32 %v2329, %v2257
        %v2331 = vsel %vm2278, %v2267, 0.0
        %v2332 = vadd.f32 %v2330, %v2331
        %v2333 = vrot.slane %v2332, 4
        %v2334 = vadd.f32 %v2332, %v2333
        %v2335 = vrot.slane %v2334, 2
        %v2336 = vadd.f32 %v2334, %v2335
        %v2337 = vrot.slane %v2336, 1
        %v2338 = vadd.f32 %v2336, %v2337
        %v2339 = vadd.f32 %v2208, %v2218
        %v2340 = vadd.f32 %v2339, %v2228
        %v2341 = vadd.f32 %v2340, %v2238
        %v2342 = vadd.f32 %v2341, %v2248
        %v2343 = vadd.f32 %v2342, %v2258
        %v2344 = vsel %vm2278, %v2268, 0.0
        %v2345 = vadd.f32 %v2343, %v2344
        %v2346 = vrot.slane %v2345, 4
        %v2347 = vadd.f32 %v2345, %v2346
        %v2348 = vrot.slane %v2347, 2
        %v2349 = vadd.f32 %v2347, %v2348
        %v2350 = vrot.slane %v2349, 1
        %v2351 = vadd.f32 %v2349, %v2350
        %v2352 = vadd.f32 %v2209, %v2219
        %v2353 = vadd.f32 %v2352, %v2229
        %v2354 = vadd.f32 %v2353, %v2239
        %v2355 = vadd.f32 %v2354, %v2249
        %v2356 = vadd.f32 %v2355, %v2259
        %v2357 = vsel %vm2278, %v2269, 0.0
        %v2358 = vadd.f32 %v2356, %v2357
        %v2359 = vrot.slane %v2358, 4
        %v2360 = vadd.f32 %v2358, %v2359
        %v2361 = vrot.slane %v2360, 2
        %v2362 = vadd.f32 %v2360, %v2361
        %v2363 = vrot.slane %v2362, 1
        %v2364 = vadd.f32 %v2362, %v2363
        %v2365 = vadd.f32 %v2210, %v2220
        %v2366 = vadd.f32 %v2365, %v2230
        %v2367 = vadd.f32 %v2366, %v2240
        %v2368 = vadd.f32 %v2367, %v2250
        %v2369 = vadd.f32 %v2368, %v2260
        %v2370 = vsel %vm2278, %v2270, 0.0
        %v2371 = vadd.f32 %v2369, %v2370
        %v2372 = vrot.slane %v2371, 4
        %v2373 = vadd.f32 %v2371, %v2372
        %v2374 = vrot.slane %v2373, 2
        %v2375 = vadd.f32 %v2373, %v2374
        %v2376 = vrot.slane %v2375, 1
        %v2377 = vadd.f32 %v2375, %v2376
        %v2378 = vadd.f32 %v2211, %v2221
        %v2379 = vadd.f32 %v2378, %v2231
        %v2380 = vadd.f32 %v2379, %v2241
        %v2381 = vadd.f32 %v2380, %v2251
        %v2382 = vadd.f32 %v2381, %v2261
        %v2383 = vsel %vm2278, %v2271, 0.0
        %v2384 = vadd.f32 %v2382, %v2383
        %v2385 = vrot.slane %v2384, 4
        %v2386 = vadd.f32 %v2384, %v2385
        %v2387 = vrot.slane %v2386, 2
        %v2388 = vadd.f32 %v2386, %v2387
        %v2389 = vrot.slane %v2388, 1
        %v2390 = vadd.f32 %v2388, %v2389
        %v2391 = vadd.f32 %v2212, %v2222
        %v2392 = vadd.f32 %v2391, %v2232
        %v2393 = vadd.f32 %v2392, %v2242
        %v2394 = vadd.f32 %v2393, %v2252
        %v2395 = vadd.f32 %v2394, %v2262
        %v2396 = vsel %vm2278, %v2272, 0.0
        %v2397 = vadd.f32 %v2395, %v2396
        %v2398 = vrot.slane %v2397, 4
        %v2399 = vadd.f32 %v2397, %v2398
        %v2400 = vrot.slane %v2399, 2
        %v2401 = vadd.f32 %v2399, %v2400
        %v2402 = vrot.slane %v2401, 1
        %v2403 = vadd.f32 %v2401, %v2402
        %v2404 = vld [vmem:[#allocation2] sm:$0x1]
        %2406 = vset.pattern.permute.xlu0 0
        %2407 = vperm.xlu0 %2406, %v2404
        %v2408 = vpop.permute.xlu0 %2407
        %v2410 = vlaneseq
        %v2411 = vshrl.u32 %v2410, 7
        %v2412 = vsub.s32 0, %v2411
        %v2413 = vrot.slane %v2408, %v2412
        %v2414 = vadd.f32 %v2286, %v2413
        %v2415 = vadd.f32 %v2299, %v2413
        %v2416 = vadd.f32 %v2312, %v2413
        %v2417 = vadd.f32 %v2325, %v2413
        %v2418 = vadd.f32 %v2338, %v2413
        %v2419 = vadd.f32 %v2351, %v2413
        %v2420 = vadd.f32 %v2364, %v2413
        %v2421 = vadd.f32 %v2377, %v2413
        %v2422 = vadd.f32 %v2390, %v2413
        %v2423 = vadd.f32 %v2403, %v2413
        %v2434 = vcombine.low %v2414, %v2415
        %v2435 = vcombine.low %v2416, %v2417
        %v2436 = vcombine.low %v2418, %v2419
        %v2437 = vcombine.low %v2420, %v2421
        %v2439 = vunpack.c.l.s4 1966171168
        %v2440 = vunpack.c.0.s8 %v2439
        %v2441 = vlaneseq
        %v2442 = vshrl.u32 %v2441, 7
        %v2443 = vsub.s32 %v2440, %v2442
        %v2444 = vrot.slane %v2434, %v2443
        %v2446 = vunpack.c.l.s4 1966171168
        %v2447 = vunpack.c.0.s8 %v2446
        %v2448 = vlaneseq
        %v2449 = vshrl.u32 %v2448, 7
        %v2450 = vsub.s32 %v2447, %v2449
        %v2451 = vrot.slane %v2435, %v2450
        %v2453 = vunpack.c.l.s4 1966171168
        %v2454 = vunpack.c.0.s8 %v2453
        %v2455 = vlaneseq
        %v2456 = vshrl.u32 %v2455, 7
        %v2457 = vsub.s32 %v2454, %v2456
        %v2458 = vrot.slane %v2436, %v2457
        %v2460 = vunpack.c.l.s4 1966171168
        %v2461 = vunpack.c.0.s8 %v2460
        %v2462 = vlaneseq
        %v2463 = vshrl.u32 %v2462, 7
        %v2464 = vsub.s32 %v2461, %v2463
        %v2465 = vrot.slane %v2437, %v2464
        %v2466 = vcombine.low %v2444, %v2451
        %v2467 = vcombine.low %v2458, %v2465
        %v2469 = vunpack.c.l.s4 1966171168
        %v2470 = vunpack.c.0.s8 %v2469
        %v2471 = vlaneseq
        %v2472 = vshrl.u32 %v2471, 7
        %v2473 = vsub.s32 %v2470, %v2472
        %v2474 = vrot.slane %v2466, %v2473
        %v2476 = vunpack.c.l.s4 1966171168
        %v2477 = vunpack.c.0.s8 %v2476
        %v2478 = vlaneseq
        %v2479 = vshrl.u32 %v2478, 7
        %v2480 = vsub.s32 %v2477, %v2479
        %v2481 = vrot.slane %v2467, %v2480
        %v2482 = vcombine.low %v2474, %v2481
        %v2483 = vcombine.low %v2422, %v2423
        %v2485 = vunpack.c.l.s4 1966171168
        %v2486 = vunpack.c.0.s8 %v2485
        %v2487 = vlaneseq
        %v2488 = vshrl.u32 %v2487, 7
        %v2489 = vsub.s32 %v2486, %v2488
        %v2490 = vrot.slane %v2483, %v2489
        %v2492 = vunpack.c.l.s4 1966171168
        %v2493 = vunpack.c.0.s8 %v2492
        %v2494 = vlaneseq
        %v2495 = vshrl.u32 %v2494, 7
        %v2496 = vsub.s32 %v2493, %v2495
        %v2497 = vrot.slane %v2490, %v2496
        %2500 = vst [vmem:[%s328] sm:$0xff] %v2482
        %v2501 = vlaneseq
        %vm2502 = vcmp.ge.s32.totalorder %v2501, 0
        %vm2503 = vcmp.lt.s32.totalorder %v2501, 256
        %vm2504 = vmand %vm2502, %vm2503
        %2505 = vst.msk [vmem:[%s328 + $0x8] sm:$0x3] %vm2504, %v2497
        %s2506 = sand.u32 %s227, 1
        %s2507 = scalar_lea.sflag [#allocation4], %s2506
        %s2508 = sand.u32 %s227, 1
        %s2509 = smul.addr %s2508, 10
        %s2510 = scalar_lea.vmem [#allocation3], %s2509
        // Predicated region
        $region57: #{tpu_custom_call.1} parent=55 // pred_check
          %p2511 = pneg %p237
        $region58: #{tpu_custom_call.1} parent=55 // pred_check_branch
          %2513 = sbr.rel (%p2511) target = $region60
        $region59: #{tpu_custom_call.1} parent=55 // pred_region
          %s2514 = smul.u32 10, %s25
          %s2516 = ssub.s32 160, 160
          %2517 = vsyncadd %s2507, %s2516
          %s2518 = smul.addr %s2514, 16
          %s2519 = scalar_lea.hbm %s9, %s2518
          %s2521 = sshll.u32 %s2510, 4
          %s2522 = int_to_ptr.vmem [resolvable:$true] %s2521
          %2524 = dma.vmem_to_hbm [thread:$0]  %s2522, 160, %s2519, %s2507
        $region60: #{tpu_custom_call.1} parent=55 // pred_fallthru
          _
      $region56: #{tpu_custom_call.1} parent=5 // pred_fallthru
        _
      %p2525 = scmp.le.s32.totalorder 2, %s20
      // Predicated region
      $region61: #{tpu_custom_call.1} parent=5 // pred_check
        %p2526 = pneg %p2525
      $region62: #{tpu_custom_call.1} parent=5 // pred_check_branch
        %2528 = sbr.rel (%p2526) target = $region64
      $region63: #{tpu_custom_call.1} parent=5 // pred_region
        %s2529 = ssub.s32 %s20, 2
        // Predicated region
        $region65: #{tpu_custom_call.1} parent=63 // pred_check
          %p2530 = pneg %p243
        $region66: #{tpu_custom_call.1} parent=63 // pred_check_branch
          %2532 = sbr.rel (%p2530) target = $region68
        $region67: #{tpu_custom_call.1} parent=63 // pred_region
          %s2533 = sand.u32 %s228, 1
          %s2534 = scalar_lea.sflag [#allocation4], %s2533
          %s2535 = sand.u32 %s228, 1
          %s2536 = smul.addr %s2535, 10
          %s2537 = scalar_lea.vmem [#allocation3], %s2536
          %2538 = dma.done %s2534, 160
        $region68: #{tpu_custom_call.1} parent=63 // pred_fallthru
          _
      $region64: #{tpu_custom_call.1} parent=5 // pred_fallthru
        _
    $region6: #{tpu_custom_call.1} parent=1 // loop_footer
      %s24 = sadd.s32 1, %s20
    $region7: #{tpu_custom_call.1} parent=1 // loop_footer_branch
      %19 = sbr.rel target = $region3
    $region8: #{tpu_custom_call.1} parent=1 // loop_exit
      _
    %2539 = vsyncpa [#allocation4], 1
    %s2540 = scalar_lea.sflag [#allocation4], 1
    %2541 = vsyncpa %s2540, 1

</llo_original>
